<compile_context>
chip_gen: v6e
topology: v6e:2x2x1
jax: 0.10.0
libtpu: 0.0.40
codegen_flags: <defaults>
</compile_context>

<pallas_src>
import math
from functools import partial

import jax
import jax.numpy as jnp
from jax.experimental import pallas as pl
from jax.experimental.pallas import tpu as pltpu


def _self_attention_kernel(x_ref, wqt_ref, wkvt_ref, wot_ref, bo_ref, o_ref,
                           kv_ref, out_scr, *, heads, q_tile):
    # x_ref:    (T, C)     full sequence for the current batch element
    # wqt_ref:  (C, C)     bf16, pre-transposed, 1/sqrt(S) folded in
    # wkvt_ref: (C, 2C)    bf16, fused [Wk^T | Wv^T]
    # wot_ref:  (C, C)     bf16, pre-transposed
    # bo_ref:   (1, C)     f32 output-projection bias
    # o_ref:    (tq, C)    output tile
    # kv_ref:   (T, 2C)    bf16 VMEM scratch: cached K | V for current batch
    # out_scr:  (tq, C)    f32 VMEM scratch: per-head outputs (lane-dense slab)
    f32 = jnp.float32
    bf16 = jnp.bfloat16
    T, C = x_ref.shape
    H = heads
    S = C // H
    tq = q_tile
    i = pl.program_id(1)

    # ---- K/V projection: once per batch element (q-tile axis is "arbitrary").
    @pl.when(i == 0)
    def _():
        x_all = x_ref[...].astype(bf16)                             # (T, C)
        kv_ref[...] = jnp.dot(x_all, wkvt_ref[...],
                              preferred_element_type=f32).astype(bf16)

    # ---- Q projection for this query tile (scale already folded into Wq^T).
    q_start = pl.multiple_of(i * tq, tq)
    xq = x_ref[pl.ds(q_start, tq), :].astype(bf16)                  # (tq, C)
    q = jnp.dot(xq, wqt_ref[...],
                preferred_element_type=f32).astype(bf16)            # (tq, C)

    row = i * tq + jax.lax.broadcasted_iota(jnp.int32, (tq, tq), 0)
    n_kv_blocks = i + 1      # causal: key blocks above the diagonal -> skipped

    # ---- Per-head flash-style loop over key blocks (online softmax).
    for h in range(H):
        qh = q[:, h * S:(h + 1) * S]                                # (tq, S)

        def kv_step(kb, carry, _qh=qh, _h=h):
            m, l, acc = carry
            k0 = pl.multiple_of(kb * tq, tq)
            kh = kv_ref[pl.ds(k0, tq), _h * S:(_h + 1) * S]         # (tq, S)
            vh = kv_ref[pl.ds(k0, tq), C + _h * S:C + (_h + 1) * S] # (tq, S)
            # (tq, tq) scores; contract last dims (no explicit K transpose).
            s = jax.lax.dot_general(_qh, kh, (((1,), (1,)), ((), ())),
                                    preferred_element_type=f32)
            col = kb * tq + jax.lax.broadcasted_iota(jnp.int32, (tq, tq), 1)
            s = jnp.where(col > row, f32(-1e30), s)
            m_new = jnp.maximum(m, jnp.max(s, axis=-1, keepdims=True))
            alpha = jnp.exp(m - m_new)
            p = jnp.exp(s - m_new)
            l_new = alpha * l + jnp.sum(p, axis=-1, keepdims=True)
            acc_new = alpha * acc + jnp.dot(p.astype(bf16), vh,
                                            preferred_element_type=f32)
            return m_new, l_new, acc_new

        m0 = jnp.full((tq, 1), -1e30, f32)
        l0 = jnp.zeros((tq, 1), f32)
        acc0 = jnp.zeros((tq, S), f32)
        m, l, acc = jax.lax.fori_loop(0, n_kv_blocks, kv_step, (m0, l0, acc0))
        # Deferred normalization on the small (tq, S) accumulator (EUP slot).
        out_scr[:, h * S:(h + 1) * S] = acc * pl.reciprocal(l, approx=True)

    # ---- unify_heads: output projection from the lane-dense scratch slab.
    y = jnp.dot(out_scr[...].astype(bf16), wot_ref[...],
                preferred_element_type=f32) + bo_ref[...]
    o_ref[...] = y.astype(o_ref.dtype)


def _pick_q_tile(T):
    for cand in (512, 256, 128, 64, 32, 16, 8):
        if T % cand == 0:
            return cand
    return T


def _vmem_limit_bytes():
    cap = 128 * 1024 * 1024
    try:
        cap = int(pltpu.get_tpu_info().vmem_capacity_bytes)
    except Exception:
        pass
    # ~3/4 of physical: 96 MiB on v5e/v6e (128 MiB), 48 MiB on v7x (64 MiB).
    return min((cap * 3) // 4, 96 * 1024 * 1024)


def self_attention(x, wq, wk, wv, wo, bo, *, heads, q_tile=None):
    B, T, C = x.shape
    assert C % heads == 0
    S = C // heads
    if q_tile is None:
        q_tile = _pick_q_tile(T)
    if T % q_tile != 0:
        q_tile = T
    num_q = T // q_tile

    bf16 = jnp.bfloat16
    scale = 1.0 / math.sqrt(S)
    # Pre-transpose once; fold 1/sqrt(S) into Wq^T; fuse Wk^T|Wv^T; cast bf16.
    wqt = (wq.T * scale).astype(bf16)                              # (C, C)
    wkvt = jnp.concatenate([wk.T, wv.T], axis=1).astype(bf16)      # (C, 2C)
    wot = wo.T.astype(bf16)                                        # (C, C)
    bo2d = bo.reshape(1, C).astype(jnp.float32)

    kernel = partial(_self_attention_kernel, heads=heads, q_tile=q_tile)

    # Advisory cost (causal skip halves attention flops / transcendentals).
    flops = 8 * B * T * C * C + 2 * B * T * T * C
    transcendentals = B * heads * T * T // 2
    bytes_accessed = 8 * B * T * C + 2 * (4 * C * C) + 4 * C
    cost = pl.CostEstimate(flops=flops, transcendentals=transcendentals,
                           bytes_accessed=bytes_accessed)

    return pl.pallas_call(
        kernel,
        out_shape=jax.ShapeDtypeStruct((B, T, C), x.dtype),
        grid_spec=pltpu.PrefetchScalarGridSpec(
            num_scalar_prefetch=0,
            grid=(B, num_q),
            in_specs=[
                pl.BlockSpec((None, T, C), lambda b, i: (b, 0, 0)),   # x (full seq)
                pl.BlockSpec((C, C), lambda b, i: (0, 0)),            # Wq^T * scale
                pl.BlockSpec((C, 2 * C), lambda b, i: (0, 0)),        # [Wk^T | Wv^T]
                pl.BlockSpec((C, C), lambda b, i: (0, 0)),            # Wo^T
                pl.BlockSpec((1, C), lambda b, i: (0, 0)),            # bias
            ],
            out_specs=pl.BlockSpec((None, q_tile, C), lambda b, i: (b, i, 0)),
            scratch_shapes=[
                pltpu.VMEM((T, 2 * C), bf16),            # cached K|V per batch
                pltpu.VMEM((q_tile, C), jnp.float32),    # per-head output slab
            ],
        ),
        compiler_params=pltpu.CompilerParams(
            # B shards across TensorCores; the q-tile axis must stay sequential
            # because the K/V cache is written at q-tile 0 and reused after.
            dimension_semantics=("parallel", "arbitrary"),
            vmem_limit_bytes=_vmem_limit_bytes(),
        ),
        cost_estimate=cost,
    )(x, wqt, wkvt, wot, bo2d)


def _reference(x, wq, wk, wv, wo, bo, heads):
    # plain-JAX f32 reference mirroring the PyTorch forward (eval mode)
    B, T, C = x.shape
    H = heads
    S = C // H
    q = x @ wq.T
    k = x @ wk.T
    v = x @ wv.T
    qh = q.reshape(B, T, H, S).transpose(0, 2, 1, 3)
    kh = k.reshape(B, T, H, S).transpose(0, 2, 1, 3)
    vh = v.reshape(B, T, H, S).transpose(0, 2, 1, 3)
    dot = jnp.einsum('bhts,bhus->bhtu', qh, kh) / math.sqrt(S)
    mask = jnp.triu(jnp.ones((T, T)), k=1) == 1
    dot = jnp.where(mask[None, None], -jnp.inf, dot)
    probs = jax.nn.softmax(dot, axis=-1)
    out = jnp.einsum('bhtu,bhus->bhts', probs, vh)
    out = out.transpose(0, 2, 1, 3).reshape(B, T, C)
    return out @ wo.T + bo[None, None, :]


if __name__ == "__main__":
    # Small shapes; T=16 with q_tile=8 exercises the multi-q-tile causal path
    # (2 key blocks for the second query tile, causal block-skip for the first).
    B, T, C, H = 2, 16, 32, 4

    key = jax.random.PRNGKey(0)
    kx, kq, kk, kv, ko, kb = jax.random.split(key, 6)
    x = jax.random.normal(kx, (B, T, C), dtype=jnp.float32)
    wq = jax.random.normal(kq, (C, C), dtype=jnp.float32) * 0.02
    wk = jax.random.normal(kk, (C, C), dtype=jnp.float32) * 0.02
    wv = jax.random.normal(kv, (C, C), dtype=jnp.float32) * 0.02
    wo = jax.random.normal(ko, (C, C), dtype=jnp.float32) * 0.02
    bo = jax.random.normal(kb, (C,), dtype=jnp.float32) * 0.02

    out = self_attention(x, wq, wk, wv, wo, bo, heads=H, q_tile=8)
    out = jax.block_until_ready(out)

    ref = _reference(x, wq, wk, wv, wo, bo, H)
    assert out.shape == (B, T, C)
    # bf16 MXU operands -> bf16-level tolerance vs. the f32 reference.
    assert jnp.allclose(out, ref, atol=3e-2, rtol=3e-2), "mismatch vs reference"

    print("KERNEL_OK")
</pallas_src>

<mosaic_0001>
module attributes {stable_mosaic.version = 11 : i64} {
  func.func @_self_attention_kernel(%arg0: i32, %arg1: i32, %arg2: memref<1x16x32xf32, #tpu.memory_space<vmem>>, %arg3: memref<32x32xbf16, #tpu.memory_space<vmem>>, %arg4: memref<32x64xbf16, #tpu.memory_space<vmem>>, %arg5: memref<32x32xbf16, #tpu.memory_space<vmem>>, %arg6: memref<1x32xf32, #tpu.memory_space<vmem>>, %arg7: memref<1x8x32xf32, #tpu.memory_space<vmem>>, %arg8: memref<16x64xbf16, #tpu.memory_space<vmem>>, %arg9: memref<8x32xf32, #tpu.memory_space<vmem>>) attributes {dimension_semantics = [#tpu.dimension_semantics<parallel>, #tpu.dimension_semantics<arbitrary>], iteration_bounds = array<i64: 2, 2>, scalar_prefetch = 0 : i64, scratch_operands = 2 : i64, tpu.core_type = #tpu.core_type<tc>, window_params = [{transform_indices = @transform_0, window_bounds = array<i64: 1, 16, 32>}, {pipeline_mode = #tpu.pipeline_mode<synchronous>, transform_indices = @transform_1, window_bounds = array<i64: 32, 32>}, {pipeline_mode = #tpu.pipeline_mode<synchronous>, transform_indices = @transform_2, window_bounds = array<i64: 32, 64>}, {pipeline_mode = #tpu.pipeline_mode<synchronous>, transform_indices = @transform_3, window_bounds = array<i64: 32, 32>}, {pipeline_mode = #tpu.pipeline_mode<synchronous>, transform_indices = @transform_4, window_bounds = array<i64: 1, 32>}, {transform_indices = @transform_5, window_bounds = array<i64: 1, 8, 32>}]} {
    %c0_i32 = arith.constant 0 : i32
    %0 = arith.cmpi eq, %arg1, %c0_i32 : i32
    %1 = arith.extui %0 : i1 to i32
    %c0_i32_0 = arith.constant 0 : i32
    %2 = arith.cmpi ne, %1, %c0_i32_0 : i32
    scf.if %2 {
      %c0_40 = arith.constant 0 : index
      %c0_41 = arith.constant 0 : index
      %c0_42 = arith.constant 0 : index
      %71 = vector.load %arg2[%c0_40, %c0_41, %c0_42] : memref<1x16x32xf32, #tpu.memory_space<vmem>>, vector<1x16x32xf32>
      %72 = vector.shape_cast %71 : vector<1x16x32xf32> to vector<16x32xf32>
      %73 = arith.truncf %72 : vector<16x32xf32> to vector<16x32xbf16>
      %c0_43 = arith.constant 0 : index
      %c0_44 = arith.constant 0 : index
      %74 = vector.load %arg4[%c0_43, %c0_44] : memref<32x64xbf16, #tpu.memory_space<vmem>>, vector<32x64xbf16>
      %cst_45 = arith.constant dense<0.000000e+00> : vector<16x64xf32>
      %75 = tpu.matmul %73, %74, %cst_45 {dimension_numbers = #tpu.dot_dimension_numbers<[1], [0], [0], [1], [0, 0, 1, 1], [], []>} : vector<16x32xbf16>, vector<32x64xbf16>, vector<16x64xf32> -> vector<16x64xf32>
      %76 = arith.truncf %75 : vector<16x64xf32> to vector<16x64xbf16>
      %c0_46 = arith.constant 0 : index
      %c0_47 = arith.constant 0 : index
      %77 = vector.load %arg8[%c0_46, %c0_47] : memref<16x64xbf16, #tpu.memory_space<vmem>>, vector<16x64xbf16>
      tpu.vector_store %arg8[%c0_46, %c0_47], %76 {strides = array<i32>} : memref<16x64xbf16, #tpu.memory_space<vmem>>, vector<16x64xbf16>,
    } else {
    }
    %c8_i32 = arith.constant 8 : i32
    %3 = arith.muli %arg1, %c8_i32 : i32
    %4 = tpu.assume_multiple %3, 8 : i32
    %c0 = arith.constant 0 : index
    %5 = arith.index_cast %4 : i32 to index
    %c0_1 = arith.constant 0 : index
    %6 = vector.load %arg2[%c0, %5, %c0_1] : memref<1x16x32xf32, #tpu.memory_space<vmem>>, vector<1x8x32xf32>
    %7 = vector.shape_cast %6 : vector<1x8x32xf32> to vector<8x32xf32>
    %8 = arith.truncf %7 : vector<8x32xf32> to vector<8x32xbf16>
    %c0_2 = arith.constant 0 : index
    %c0_3 = arith.constant 0 : index
    %9 = vector.load %arg3[%c0_2, %c0_3] : memref<32x32xbf16, #tpu.memory_space<vmem>>, vector<32x32xbf16>
    %cst = arith.constant dense<0.000000e+00> : vector<8x32xf32>
    %10 = tpu.matmul %8, %9, %cst {dimension_numbers = #tpu.dot_dimension_numbers<[1], [0], [0], [1], [0, 0, 1, 1], [], []>} : vector<8x32xbf16>, vector<32x32xbf16>, vector<8x32xf32> -> vector<8x32xf32>
    %11 = arith.truncf %10 : vector<8x32xf32> to vector<8x32xbf16>
    %c8_i32_4 = arith.constant 8 : i32
    %12 = arith.muli %arg1, %c8_i32_4 : i32
    %13 = tpu.iota {dimensions = array<i32: 0>} : vector<8x8xi32>
    %14 = vector.broadcast %12 : i32 to vector<8x8xi32>
    %15 = arith.addi %14, %13 : vector<8x8xi32>
    %c1_i32 = arith.constant 1 : i32
    %16 = arith.addi %arg1, %c1_i32 : i32
    %17 = vector.extract_strided_slice %11 {offsets = [0, 0], sizes = [8, 8], strides = [1, 1]} : vector<8x32xbf16> to vector<8x8xbf16>
    %cst_5 = arith.constant -1.000000e+30 : f32
    %18 = vector.broadcast %cst_5 : f32 to vector<8x1xf32>
    %cst_6 = arith.constant 0.000000e+00 : f32
    %19 = vector.broadcast %cst_6 : f32 to vector<8x1xf32>
    %cst_7 = arith.constant 0.000000e+00 : f32
    %20 = vector.broadcast %cst_7 : f32 to vector<8x8xf32>
    %c0_i32_8 = arith.constant 0 : i32
    %21 = arith.subi %16, %c0_i32_8 : i32
    %22 = arith.addi %c0_i32_8, %21 : i32
    %c1_i32_9 = arith.constant 1 : i32
    %23:3 = scf.for %arg10 = %c0_i32_8 to %22 step %c1_i32_9 iter_args(%arg11 = %18, %arg12 = %19, %arg13 = %20) -> (vector<8x1xf32>, vector<8x1xf32>, vector<8x8xf32>)  : i32 {
      %c8_i32_40 = arith.constant 8 : i32
      %71 = arith.muli %arg10, %c8_i32_40 : i32
      %72 = tpu.assume_multiple %71, 8 : i32
      %73 = arith.index_cast %72 : i32 to index
      %c0_41 = arith.constant 0 : index
      %74 = vector.load %arg8[%73, %c0_41] : memref<16x64xbf16, #tpu.memory_space<vmem>>, vector<8x8xbf16>
      %75 = arith.index_cast %72 : i32 to index
      %c32 = arith.constant 32 : index
      %76 = vector.load %arg8[%75, %c32] : memref<16x64xbf16, #tpu.memory_space<vmem>>, vector<8x8xbf16>
      %cst_42 = arith.constant dense<0.000000e+00> : vector<8x8xf32>
      %77 = tpu.matmul %17, %74, %cst_42 {dimension_numbers = #tpu.dot_dimension_numbers<[1], [1], [0], [0], [0, 0, 1, 0], [], []>} : vector<8x8xbf16>, vector<8x8xbf16>, vector<8x8xf32> -> vector<8x8xf32>
      %c8_i32_43 = arith.constant 8 : i32
      %78 = arith.muli %arg10, %c8_i32_43 : i32
      %79 = tpu.iota {dimensions = array<i32: 1>} : vector<8x8xi32>
      %80 = vector.broadcast %78 : i32 to vector<8x8xi32>
      %81 = arith.addi %80, %79 : vector<8x8xi32>
      %82 = arith.cmpi sgt, %81, %15 : vector<8x8xi32>
      %cst_44 = arith.constant -1.000000e+30 : f32
      %83 = vector.broadcast %cst_44 : f32 to vector<8x8xf32>
      %84 = arith.select %82, %83, %77 : vector<8x8xi1>, vector<8x8xf32>
      %cst_45 = arith.constant dense<0xFF800000> : vector<8xf32>
      %85 = vector.multi_reduction <maximumf>, %84, %cst_45 [1] : vector<8x8xf32> to vector<8xf32>
      %86 = vector.shape_cast %85 : vector<8xf32> to vector<8x1xf32>
      %87 = arith.maximumf %arg11, %86 : vector<8x1xf32>
      %88 = arith.subf %arg11, %87 : vector<8x1xf32>
      %89 = math.exp %88 : vector<8x1xf32>
      %90 = vector.broadcast %87 : vector<8x1xf32> to vector<8x8xf32>
      %91 = arith.subf %84, %90 : vector<8x8xf32>
      %92 = math.exp %91 : vector<8x8xf32>
      %93 = arith.mulf %89, %arg12 : vector<8x1xf32>
      %cst_46 = arith.constant dense<0.000000e+00> : vector<8xf32>
      %94 = vector.multi_reduction <add>, %92, %cst_46 [1] : vector<8x8xf32> to vector<8xf32>
      %95 = vector.shape_cast %94 : vector<8xf32> to vector<8x1xf32>
      %96 = arith.addf %93, %95 : vector<8x1xf32>
      %97 = vector.broadcast %89 : vector<8x1xf32> to vector<8x8xf32>
      %98 = arith.mulf %97, %arg13 : vector<8x8xf32>
      %99 = arith.truncf %92 : vector<8x8xf32> to vector<8x8xbf16>
      %cst_47 = arith.constant dense<0.000000e+00> : vector<8x8xf32>
      %100 = tpu.matmul %99, %76, %cst_47 {dimension_numbers = #tpu.dot_dimension_numbers<[1], [0], [0], [1], [0, 0, 1, 1], [], []>} : vector<8x8xbf16>, vector<8x8xbf16>, vector<8x8xf32> -> vector<8x8xf32>
      %101 = arith.addf %98, %100 : vector<8x8xf32>
      scf.yield %87, %96, %101 : vector<8x1xf32>, vector<8x1xf32>, vector<8x8xf32>
    }
    %24 = tpu.reciprocal %23#1 {approx = true} : vector<8x1xf32> -> vector<8x1xf32>
    %25 = vector.broadcast %24 : vector<8x1xf32> to vector<8x8xf32>
    %26 = arith.mulf %23#2, %25 : vector<8x8xf32>
    %c0_10 = arith.constant 0 : index
    %c0_11 = arith.constant 0 : index
    %27 = vector.load %arg9[%c0_10, %c0_11] : memref<8x32xf32, #tpu.memory_space<vmem>>, vector<8x8xf32>
    tpu.vector_store %arg9[%c0_10, %c0_11], %26 {strides = array<i32>} : memref<8x32xf32, #tpu.memory_space<vmem>>, vector<8x8xf32>,
    %28 = vector.extract_strided_slice %11 {offsets = [0, 8], sizes = [8, 8], strides = [1, 1]} : vector<8x32xbf16> to vector<8x8xbf16>
    %cst_12 = arith.constant -1.000000e+30 : f32
    %29 = vector.broadcast %cst_12 : f32 to vector<8x1xf32>
    %cst_13 = arith.constant 0.000000e+00 : f32
    %30 = vector.broadcast %cst_13 : f32 to vector<8x1xf32>
    %cst_14 = arith.constant 0.000000e+00 : f32
    %31 = vector.broadcast %cst_14 : f32 to vector<8x8xf32>
    %c0_i32_15 = arith.constant 0 : i32
    %32 = arith.subi %16, %c0_i32_15 : i32
    %33 = arith.addi %c0_i32_15, %32 : i32
    %c1_i32_16 = arith.constant 1 : i32
    %34:3 = scf.for %arg10 = %c0_i32_15 to %33 step %c1_i32_16 iter_args(%arg11 = %29, %arg12 = %30, %arg13 = %31) -> (vector<8x1xf32>, vector<8x1xf32>, vector<8x8xf32>)  : i32 {
      %c8_i32_40 = arith.constant 8 : i32
      %71 = arith.muli %arg10, %c8_i32_40 : i32
      %72 = tpu.assume_multiple %71, 8 : i32
      %73 = arith.index_cast %72 : i32 to index
      %c8_41 = arith.constant 8 : index
      %74 = vector.load %arg8[%73, %c8_41] : memref<16x64xbf16, #tpu.memory_space<vmem>>, vector<8x8xbf16>
      %75 = arith.index_cast %72 : i32 to index
      %c40 = arith.constant 40 : index
      %76 = vector.load %arg8[%75, %c40] : memref<16x64xbf16, #tpu.memory_space<vmem>>, vector<8x8xbf16>
      %cst_42 = arith.constant dense<0.000000e+00> : vector<8x8xf32>
      %77 = tpu.matmul %28, %74, %cst_42 {dimension_numbers = #tpu.dot_dimension_numbers<[1], [1], [0], [0], [0, 0, 1, 0], [], []>} : vector<8x8xbf16>, vector<8x8xbf16>, vector<8x8xf32> -> vector<8x8xf32>
      %c8_i32_43 = arith.constant 8 : i32
      %78 = arith.muli %arg10, %c8_i32_43 : i32
      %79 = tpu.iota {dimensions = array<i32: 1>} : vector<8x8xi32>
      %80 = vector.broadcast %78 : i32 to vector<8x8xi32>
      %81 = arith.addi %80, %79 : vector<8x8xi32>
      %82 = arith.cmpi sgt, %81, %15 : vector<8x8xi32>
      %cst_44 = arith.constant -1.000000e+30 : f32
      %83 = vector.broadcast %cst_44 : f32 to vector<8x8xf32>
      %84 = arith.select %82, %83, %77 : vector<8x8xi1>, vector<8x8xf32>
      %cst_45 = arith.constant dense<0xFF800000> : vector<8xf32>
      %85 = vector.multi_reduction <maximumf>, %84, %cst_45 [1] : vector<8x8xf32> to vector<8xf32>
      %86 = vector.shape_cast %85 : vector<8xf32> to vector<8x1xf32>
      %87 = arith.maximumf %arg11, %86 : vector<8x1xf32>
      %88 = arith.subf %arg11, %87 : vector<8x1xf32>
      %89 = math.exp %88 : vector<8x1xf32>
      %90 = vector.broadcast %87 : vector<8x1xf32> to vector<8x8xf32>
      %91 = arith.subf %84, %90 : vector<8x8xf32>
      %92 = math.exp %91 : vector<8x8xf32>
      %93 = arith.mulf %89, %arg12 : vector<8x1xf32>
      %cst_46 = arith.constant dense<0.000000e+00> : vector<8xf32>
      %94 = vector.multi_reduction <add>, %92, %cst_46 [1] : vector<8x8xf32> to vector<8xf32>
      %95 = vector.shape_cast %94 : vector<8xf32> to vector<8x1xf32>
      %96 = arith.addf %93, %95 : vector<8x1xf32>
      %97 = vector.broadcast %89 : vector<8x1xf32> to vector<8x8xf32>
      %98 = arith.mulf %97, %arg13 : vector<8x8xf32>
      %99 = arith.truncf %92 : vector<8x8xf32> to vector<8x8xbf16>
      %cst_47 = arith.constant dense<0.000000e+00> : vector<8x8xf32>
      %100 = tpu.matmul %99, %76, %cst_47 {dimension_numbers = #tpu.dot_dimension_numbers<[1], [0], [0], [1], [0, 0, 1, 1], [], []>} : vector<8x8xbf16>, vector<8x8xbf16>, vector<8x8xf32> -> vector<8x8xf32>
      %101 = arith.addf %98, %100 : vector<8x8xf32>
      scf.yield %87, %96, %101 : vector<8x1xf32>, vector<8x1xf32>, vector<8x8xf32>
    }
    %35 = tpu.reciprocal %34#1 {approx = true} : vector<8x1xf32> -> vector<8x1xf32>
    %36 = vector.broadcast %35 : vector<8x1xf32> to vector<8x8xf32>
    %37 = arith.mulf %34#2, %36 : vector<8x8xf32>
    %c0_17 = arith.constant 0 : index
    %c8 = arith.constant 8 : index
    %38 = vector.load %arg9[%c0_17, %c8] : memref<8x32xf32, #tpu.memory_space<vmem>>, vector<8x8xf32>
    tpu.vector_store %arg9[%c0_17, %c8], %37 {strides = array<i32>} : memref<8x32xf32, #tpu.memory_space<vmem>>, vector<8x8xf32>,
    %39 = vector.extract_strided_slice %11 {offsets = [0, 16], sizes = [8, 8], strides = [1, 1]} : vector<8x32xbf16> to vector<8x8xbf16>
    %cst_18 = arith.constant -1.000000e+30 : f32
    %40 = vector.broadcast %cst_18 : f32 to vector<8x1xf32>
    %cst_19 = arith.constant 0.000000e+00 : f32
    %41 = vector.broadcast %cst_19 : f32 to vector<8x1xf32>
    %cst_20 = arith.constant 0.000000e+00 : f32
    %42 = vector.broadcast %cst_20 : f32 to vector<8x8xf32>
    %c0_i32_21 = arith.constant 0 : i32
    %43 = arith.subi %16, %c0_i32_21 : i32
    %44 = arith.addi %c0_i32_21, %43 : i32
    %c1_i32_22 = arith.constant 1 : i32
    %45:3 = scf.for %arg10 = %c0_i32_21 to %44 step %c1_i32_22 iter_args(%arg11 = %40, %arg12 = %41, %arg13 = %42) -> (vector<8x1xf32>, vector<8x1xf32>, vector<8x8xf32>)  : i32 {
      %c8_i32_40 = arith.constant 8 : i32
      %71 = arith.muli %arg10, %c8_i32_40 : i32
      %72 = tpu.assume_multiple %71, 8 : i32
      %73 = arith.index_cast %72 : i32 to index
      %c16_41 = arith.constant 16 : index
      %74 = vector.load %arg8[%73, %c16_41] : memref<16x64xbf16, #tpu.memory_space<vmem>>, vector<8x8xbf16>
      %75 = arith.index_cast %72 : i32 to index
      %c48 = arith.constant 48 : index
      %76 = vector.load %arg8[%75, %c48] : memref<16x64xbf16, #tpu.memory_space<vmem>>, vector<8x8xbf16>
      %cst_42 = arith.constant dense<0.000000e+00> : vector<8x8xf32>
      %77 = tpu.matmul %39, %74, %cst_42 {dimension_numbers = #tpu.dot_dimension_numbers<[1], [1], [0], [0], [0, 0, 1, 0], [], []>} : vector<8x8xbf16>, vector<8x8xbf16>, vector<8x8xf32> -> vector<8x8xf32>
      %c8_i32_43 = arith.constant 8 : i32
      %78 = arith.muli %arg10, %c8_i32_43 : i32
      %79 = tpu.iota {dimensions = array<i32: 1>} : vector<8x8xi32>
      %80 = vector.broadcast %78 : i32 to vector<8x8xi32>
      %81 = arith.addi %80, %79 : vector<8x8xi32>
      %82 = arith.cmpi sgt, %81, %15 : vector<8x8xi32>
      %cst_44 = arith.constant -1.000000e+30 : f32
      %83 = vector.broadcast %cst_44 : f32 to vector<8x8xf32>
      %84 = arith.select %82, %83, %77 : vector<8x8xi1>, vector<8x8xf32>
      %cst_45 = arith.constant dense<0xFF800000> : vector<8xf32>
      %85 = vector.multi_reduction <maximumf>, %84, %cst_45 [1] : vector<8x8xf32> to vector<8xf32>
      %86 = vector.shape_cast %85 : vector<8xf32> to vector<8x1xf32>
      %87 = arith.maximumf %arg11, %86 : vector<8x1xf32>
      %88 = arith.subf %arg11, %87 : vector<8x1xf32>
      %89 = math.exp %88 : vector<8x1xf32>
      %90 = vector.broadcast %87 : vector<8x1xf32> to vector<8x8xf32>
      %91 = arith.subf %84, %90 : vector<8x8xf32>
      %92 = math.exp %91 : vector<8x8xf32>
      %93 = arith.mulf %89, %arg12 : vector<8x1xf32>
      %cst_46 = arith.constant dense<0.000000e+00> : vector<8xf32>
      %94 = vector.multi_reduction <add>, %92, %cst_46 [1] : vector<8x8xf32> to vector<8xf32>
      %95 = vector.shape_cast %94 : vector<8xf32> to vector<8x1xf32>
      %96 = arith.addf %93, %95 : vector<8x1xf32>
      %97 = vector.broadcast %89 : vector<8x1xf32> to vector<8x8xf32>
      %98 = arith.mulf %97, %arg13 : vector<8x8xf32>
      %99 = arith.truncf %92 : vector<8x8xf32> to vector<8x8xbf16>
      %cst_47 = arith.constant dense<0.000000e+00> : vector<8x8xf32>
      %100 = tpu.matmul %99, %76, %cst_47 {dimension_numbers = #tpu.dot_dimension_numbers<[1], [0], [0], [1], [0, 0, 1, 1], [], []>} : vector<8x8xbf16>, vector<8x8xbf16>, vector<8x8xf32> -> vector<8x8xf32>
      %101 = arith.addf %98, %100 : vector<8x8xf32>
      scf.yield %87, %96, %101 : vector<8x1xf32>, vector<8x1xf32>, vector<8x8xf32>
    }
    %46 = tpu.reciprocal %45#1 {approx = true} : vector<8x1xf32> -> vector<8x1xf32>
    %47 = vector.broadcast %46 : vector<8x1xf32> to vector<8x8xf32>
    %48 = arith.mulf %45#2, %47 : vector<8x8xf32>
    %c0_23 = arith.constant 0 : index
    %c16 = arith.constant 16 : index
    %49 = vector.load %arg9[%c0_23, %c16] : memref<8x32xf32, #tpu.memory_space<vmem>>, vector<8x8xf32>
    tpu.vector_store %arg9[%c0_23, %c16], %48 {strides = array<i32>} : memref<8x32xf32, #tpu.memory_space<vmem>>, vector<8x8xf32>,
    %50 = vector.extract_strided_slice %11 {offsets = [0, 24], sizes = [8, 8], strides = [1, 1]} : vector<8x32xbf16> to vector<8x8xbf16>
    %cst_24 = arith.constant -1.000000e+30 : f32
    %51 = vector.broadcast %cst_24 : f32 to vector<8x1xf32>
    %cst_25 = arith.constant 0.000000e+00 : f32
    %52 = vector.broadcast %cst_25 : f32 to vector<8x1xf32>
    %cst_26 = arith.constant 0.000000e+00 : f32
    %53 = vector.broadcast %cst_26 : f32 to vector<8x8xf32>
    %c0_i32_27 = arith.constant 0 : i32
    %54 = arith.subi %16, %c0_i32_27 : i32
    %55 = arith.addi %c0_i32_27, %54 : i32
    %c1_i32_28 = arith.constant 1 : i32
    %56:3 = scf.for %arg10 = %c0_i32_27 to %55 step %c1_i32_28 iter_args(%arg11 = %51, %arg12 = %52, %arg13 = %53) -> (vector<8x1xf32>, vector<8x1xf32>, vector<8x8xf32>)  : i32 {
      %c8_i32_40 = arith.constant 8 : i32
      %71 = arith.muli %arg10, %c8_i32_40 : i32
      %72 = tpu.assume_multiple %71, 8 : i32
      %73 = arith.index_cast %72 : i32 to index
      %c24_41 = arith.constant 24 : index
      %74 = vector.load %arg8[%73, %c24_41] : memref<16x64xbf16, #tpu.memory_space<vmem>>, vector<8x8xbf16>
      %75 = arith.index_cast %72 : i32 to index
      %c56 = arith.constant 56 : index
      %76 = vector.load %arg8[%75, %c56] : memref<16x64xbf16, #tpu.memory_space<vmem>>, vector<8x8xbf16>
      %cst_42 = arith.constant dense<0.000000e+00> : vector<8x8xf32>
      %77 = tpu.matmul %50, %74, %cst_42 {dimension_numbers = #tpu.dot_dimension_numbers<[1], [1], [0], [0], [0, 0, 1, 0], [], []>} : vector<8x8xbf16>, vector<8x8xbf16>, vector<8x8xf32> -> vector<8x8xf32>
      %c8_i32_43 = arith.constant 8 : i32
      %78 = arith.muli %arg10, %c8_i32_43 : i32
      %79 = tpu.iota {dimensions = array<i32: 1>} : vector<8x8xi32>
      %80 = vector.broadcast %78 : i32 to vector<8x8xi32>
      %81 = arith.addi %80, %79 : vector<8x8xi32>
      %82 = arith.cmpi sgt, %81, %15 : vector<8x8xi32>
      %cst_44 = arith.constant -1.000000e+30 : f32
      %83 = vector.broadcast %cst_44 : f32 to vector<8x8xf32>
      %84 = arith.select %82, %83, %77 : vector<8x8xi1>, vector<8x8xf32>
      %cst_45 = arith.constant dense<0xFF800000> : vector<8xf32>
      %85 = vector.multi_reduction <maximumf>, %84, %cst_45 [1] : vector<8x8xf32> to vector<8xf32>
      %86 = vector.shape_cast %85 : vector<8xf32> to vector<8x1xf32>
      %87 = arith.maximumf %arg11, %86 : vector<8x1xf32>
      %88 = arith.subf %arg11, %87 : vector<8x1xf32>
      %89 = math.exp %88 : vector<8x1xf32>
      %90 = vector.broadcast %87 : vector<8x1xf32> to vector<8x8xf32>
      %91 = arith.subf %84, %90 : vector<8x8xf32>
      %92 = math.exp %91 : vector<8x8xf32>
      %93 = arith.mulf %89, %arg12 : vector<8x1xf32>
      %cst_46 = arith.constant dense<0.000000e+00> : vector<8xf32>
      %94 = vector.multi_reduction <add>, %92, %cst_46 [1] : vector<8x8xf32> to vector<8xf32>
      %95 = vector.shape_cast %94 : vector<8xf32> to vector<8x1xf32>
      %96 = arith.addf %93, %95 : vector<8x1xf32>
      %97 = vector.broadcast %89 : vector<8x1xf32> to vector<8x8xf32>
      %98 = arith.mulf %97, %arg13 : vector<8x8xf32>
      %99 = arith.truncf %92 : vector<8x8xf32> to vector<8x8xbf16>
      %cst_47 = arith.constant dense<0.000000e+00> : vector<8x8xf32>
      %100 = tpu.matmul %99, %76, %cst_47 {dimension_numbers = #tpu.dot_dimension_numbers<[1], [0], [0], [1], [0, 0, 1, 1], [], []>} : vector<8x8xbf16>, vector<8x8xbf16>, vector<8x8xf32> -> vector<8x8xf32>
      %101 = arith.addf %98, %100 : vector<8x8xf32>
      scf.yield %87, %96, %101 : vector<8x1xf32>, vector<8x1xf32>, vector<8x8xf32>
    }
    %57 = tpu.reciprocal %56#1 {approx = true} : vector<8x1xf32> -> vector<8x1xf32>
    %58 = vector.broadcast %57 : vector<8x1xf32> to vector<8x8xf32>
    %59 = arith.mulf %56#2, %58 : vector<8x8xf32>
    %c0_29 = arith.constant 0 : index
    %c24 = arith.constant 24 : index
    %60 = vector.load %arg9[%c0_29, %c24] : memref<8x32xf32, #tpu.memory_space<vmem>>, vector<8x8xf32>
    tpu.vector_store %arg9[%c0_29, %c24], %59 {strides = array<i32>} : memref<8x32xf32, #tpu.memory_space<vmem>>, vector<8x8xf32>,
    %c0_30 = arith.constant 0 : index
    %c0_31 = arith.constant 0 : index
    %61 = vector.load %arg9[%c0_30, %c0_31] : memref<8x32xf32, #tpu.memory_space<vmem>>, vector<8x32xf32>
    %62 = arith.truncf %61 : vector<8x32xf32> to vector<8x32xbf16>
    %c0_32 = arith.constant 0 : index
    %c0_33 = arith.constant 0 : index
    %63 = vector.load %arg5[%c0_32, %c0_33] : memref<32x32xbf16, #tpu.memory_space<vmem>>, vector<32x32xbf16>
    %cst_34 = arith.constant dense<0.000000e+00> : vector<8x32xf32>
    %64 = tpu.matmul %62, %63, %cst_34 {dimension_numbers = #tpu.dot_dimension_numbers<[1], [0], [0], [1], [0, 0, 1, 1], [], []>} : vector<8x32xbf16>, vector<32x32xbf16>, vector<8x32xf32> -> vector<8x32xf32>
    %c0_35 = arith.constant 0 : index
    %c0_36 = arith.constant 0 : index
    %65 = vector.load %arg6[%c0_35, %c0_36] : memref<1x32xf32, #tpu.memory_space<vmem>>, vector<1x32xf32>
    %66 = vector.broadcast %65 : vector<1x32xf32> to vector<8x32xf32>
    %67 = arith.addf %64, %66 : vector<8x32xf32>
    %c0_37 = arith.constant 0 : index
    %c0_38 = arith.constant 0 : index
    %c0_39 = arith.constant 0 : index
    %68 = vector.load %arg7[%c0_37, %c0_38, %c0_39] : memref<1x8x32xf32, #tpu.memory_space<vmem>>, vector<1x8x32xf32>
    %69 = vector.shape_cast %68 : vector<1x8x32xf32> to vector<8x32xf32>
    %70 = vector.shape_cast %67 : vector<8x32xf32> to vector<1x8x32xf32>
    tpu.vector_store %arg7[%c0_37, %c0_38, %c0_39], %70 {strides = array<i32>} : memref<1x8x32xf32, #tpu.memory_space<vmem>>, vector<1x8x32xf32>,
    return
  }
  func.func @transform_0(%arg0: i32, %arg1: i32) -> (i32, i32, i32) {
    %c0_i32 = arith.constant 0 : i32
    %c0_i32_0 = arith.constant 0 : i32
    %c0_i32_1 = arith.constant 0 : i32
    return %arg0, %c0_i32, %c0_i32_0 : i32, i32, i32
  }
  func.func @transform_1(%arg0: i32, %arg1: i32) -> (i32, i32) {
    %c0_i32 = arith.constant 0 : i32
    %c0_i32_0 = arith.constant 0 : i32
    %c0_i32_1 = arith.constant 0 : i32
    return %c0_i32, %c0_i32_0 : i32, i32
  }
  func.func @transform_2(%arg0: i32, %arg1: i32) -> (i32, i32) {
    %c0_i32 = arith.constant 0 : i32
    %c0_i32_0 = arith.constant 0 : i32
    %c0_i32_1 = arith.constant 0 : i32
    return %c0_i32, %c0_i32_0 : i32, i32
  }
  func.func @transform_3(%arg0: i32, %arg1: i32) -> (i32, i32) {
    %c0_i32 = arith.constant 0 : i32
    %c0_i32_0 = arith.constant 0 : i32
    %c0_i32_1 = arith.constant 0 : i32
    return %c0_i32, %c0_i32_0 : i32, i32
  }
  func.func @transform_4(%arg0: i32, %arg1: i32) -> (i32, i32) {
    %c0_i32 = arith.constant 0 : i32
    %c0_i32_0 = arith.constant 0 : i32
    %c0_i32_1 = arith.constant 0 : i32
    return %c0_i32, %c0_i32_0 : i32, i32
  }
  func.func @transform_5(%arg0: i32, %arg1: i32) -> (i32, i32, i32) {
    %c0_i32 = arith.constant 0 : i32
    %c0_i32_0 = arith.constant 0 : i32
    return %arg0, %arg1, %c0_i32 : i32, i32, i32
  }
}

</mosaic_0001>

<llo_original>
// kernel: tpu_custom_call.1
$region0: #{tpu_custom_call.1}
  #allocation0 [shape = 'u32[]', space=smem, size = 0x4, offset = 0x4, fixed_abs, tag = 'smem constant byte address 0x4 - core index']
  #allocation1 [shape = 'u32[144,128]{1,0:T(1,128)}', space=vmem, size = 0x12000, scoped, tag = 'internal scratch']
  #allocation2 [shape = 'bf16[16,64]{1,0:T(8,128)(2,1)}', space=vmem, size = 0x1000, scoped, tag = 'scratch operand']
  #allocation3 [shape = 'f32[8,32]{1,0:T(8,128)}', space=vmem, size = 0x1000, scoped, tag = 'scratch operand']
  %s0 = inlined_call_operand.hbm [shape: f32[2,16,32], index: 0, kind: input, shape index: {}]
  %s1 = inlined_call_operand.hbm [shape: bf16[32,32], index: 1, kind: input, shape index: {}]
  %s2 = inlined_call_operand.hbm [shape: bf16[32,64], index: 2, kind: input, shape index: {}]
  %s3 = inlined_call_operand.hbm [shape: bf16[32,32], index: 3, kind: input, shape index: {}]
  %s4 = inlined_call_operand.vmem [shape: f32[1,32], index: 4, kind: input, shape index: {}]
  %s5 = inlined_call_operand.hbm [shape: f32[2,16,32], index: 5, kind: output, shape index: {}]
  %s6 = sld [smem:[#allocation0]]
  $region101: #{tpu_custom_call.1} parent=0
    _
  %s8 = ssub.s32 1, %s6
  %s9 = scalar_select 0, %s8, %s6
  $region1: #{tpu_custom_call.1} parent=0
    #allocation4 [shape = 'u8[16384]{0}', space=vmem, size = 0x4000, scoped, tag = 'input window, operand 0']
    #allocation5 [shape = 's32[2]{0}', space=sflag, size = 0x8, scoped, tag = 'scoped memory for tpu_custom_call.1']
    #allocation6 [shape = 's32[2]{0}', space=sflag, size = 0x8, scoped, tag = 'scoped memory for tpu_custom_call.1']
    #allocation7 [shape = 'u8[8192]{0}', space=vmem, size = 0x2000, scoped, tag = 'input window, operand 1, single buffered']
    #allocation8 [shape = 's32[1]{0}', space=sflag, size = 0x4, scoped, tag = 'scoped memory for tpu_custom_call.1']
    #allocation9 [shape = 'u8[8192]{0}', space=vmem, size = 0x2000, scoped, tag = 'input window, operand 2, single buffered']
    #allocation10 [shape = 'u8[8192]{0}', space=vmem, size = 0x2000, scoped, tag = 'input window, operand 3, single buffered']
    #allocation11 [shape = 's32[1]{0}', space=sflag, size = 0x4, scoped, tag = 'scoped memory for tpu_custom_call.1']
    #allocation12 [shape = 'u8[8192]{0}', space=vmem, size = 0x2000, scoped, tag = 'output window, operand 0']
    %10 = vsyncpa [#allocation5], 0
    %s11 = scalar_lea.sflag [#allocation5], 1
    %12 = vsyncpa %s11, 0
    %13 = vsyncpa [#allocation8], 0
    %14 = vsyncpa [#allocation11], 0
    %15 = vsyncpa [#allocation6], 0
    %s16 = scalar_lea.sflag [#allocation6], 1
    %17 = vsyncpa %s16, 0
    loop: start=0, step=1, limit=6
    $region2: #{tpu_custom_call.1} parent=1 // loop_pre_header
      _
    $region3: #{tpu_custom_call.1} parent=1 // loop_header
      %s19 = sphi 0, %s23
      %p20 = scmp.ge.s32.totalorder %s19, 6
      %s26 = sphi 0, %s38
      %s27 = sphi 0, %s34
      %s28 = sphi 0, %s26
      %s29 = sphi 0, %s27
      %s30 = sphi 0, %s28
      %s31 = sphi 0, %s29
      %s41 = sphi 0, %s43
      %s44 = sphi 0, %s41
      %s45 = sphi 0, %s44
      %s61 = sphi 0, %s45
      %s65 = sphi 0, %s65
      %s67 = sphi 0, %s65
      %s68 = sphi 0, %s67
      %s82 = sphi 0, %s68
      %s86 = sphi 0, %s86
      %s88 = sphi 0, %s86
      %s89 = sphi 0, %s88
      %s103 = sphi 0, %s89
      %s107 = sphi 0, %s107
      %s109 = sphi 0, %s107
      %s110 = sphi 0, %s109
      %s124 = sphi 0, %s110
      %s128 = sphi 0, %s128
      %s130 = sphi 0, %s128
      %s131 = sphi 0, %s130
      %s145 = sphi 0, %s131
      %s153 = sphi 0, %s155
      %s156 = sphi 0, %s153
      %s157 = sphi 0, %s156
      %s173 = sphi 0, %s157
    $region4: #{tpu_custom_call.1} parent=1 // loop_header_branch
      %22 = sbr.rel (%p20) target = $region8
    $region5: #{tpu_custom_call.1} parent=1 // loop_body
      %s24 = ssub.s32 %s19, 1
      %s25 = ssub.s32 %s19, 2
      %s32 = sadd.s32 1, %s27
      %p33 = scmp.ge.s32.totalorder %s32, 2
      %s34 = scalar_select %p33, 0, %s32
      %s35 = sadd.s32 1, %s26
      %s36 = scalar_select %p33, %s35, %s26
      %p37 = scmp.ge.s32.totalorder %s36, 2
      %s38 = scalar_select %p37, 0, %s36
      %s39 = ssub.s32 %s26, %s38
      %p40 = scmp.eq.s32.totalorder %s39, 0
      %s42 = sadd.s32 %s41, 1
      %s43 = scalar_select %p40, %s41, %s42
      %p46 = pneg %p40
      %p47 = scmp.eq.s32.totalorder %s19, 3
      %p48 = por %p46, %p47
      %p49 = scmp.ne.s32.totalorder %s41, %s44
      %p50 = scmp.eq.s32.totalorder %s19, 0
      %p51 = por %p49, %p50
      %p52 = scmp.ne.s32.totalorder %s41, %s44
      %p53 = scmp.eq.s32.totalorder %s24, 3
      %p54 = por %p52, %p53
      %p55 = scmp.ne.s32.totalorder %s44, %s45
      %p56 = scmp.eq.s32.totalorder %s24, 0
      %p57 = por %p55, %p56
      %p58 = scmp.ne.s32.totalorder %s44, %s45
      %p59 = scmp.eq.s32.totalorder %s25, 3
      %p60 = por %p58, %p59
      %p62 = scmp.ne.s32.totalorder %s45, %s61
      %p63 = scmp.eq.s32.totalorder %s25, 0
      %p64 = por %p62, %p63
      %s66 = sadd.s32 %s65, 1
      %p69 = scmp.eq.s32.totalorder %s19, 3
      %p70 = scmp.ne.s32.totalorder %s65, %s67
      %p71 = scmp.eq.s32.totalorder %s19, 0
      %p72 = por %p70, %p71
      %p73 = scmp.ne.s32.totalorder %s65, %s67
      %p74 = scmp.eq.s32.totalorder %s24, 3
      %p75 = por %p73, %p74
      %p76 = scmp.ne.s32.totalorder %s67, %s68
      %p77 = scmp.eq.s32.totalorder %s24, 0
      %p78 = por %p76, %p77
      %p79 = scmp.ne.s32.totalorder %s67, %s68
      %p80 = scmp.eq.s32.totalorder %s25, 3
      %p81 = por %p79, %p80
      %p83 = scmp.ne.s32.totalorder %s68, %s82
      %p84 = scmp.eq.s32.totalorder %s25, 0
      %p85 = por %p83, %p84
      %s87 = sadd.s32 %s86, 1
      %p90 = scmp.eq.s32.totalorder %s19, 3
      %p91 = scmp.ne.s32.totalorder %s86, %s88
      %p92 = scmp.eq.s32.totalorder %s19, 0
      %p93 = por %p91, %p92
      %p94 = scmp.ne.s32.totalorder %s86, %s88
      %p95 = scmp.eq.s32.totalorder %s24, 3
      %p96 = por %p94, %p95
      %p97 = scmp.ne.s32.totalorder %s88, %s89
      %p98 = scmp.eq.s32.totalorder %s24, 0
      %p99 = por %p97, %p98
      %p100 = scmp.ne.s32.totalorder %s88, %s89
      %p101 = scmp.eq.s32.totalorder %s25, 3
      %p102 = por %p100, %p101
      %p104 = scmp.ne.s32.totalorder %s89, %s103
      %p105 = scmp.eq.s32.totalorder %s25, 0
      %p106 = por %p104, %p105
      %s108 = sadd.s32 %s107, 1
      %p111 = scmp.eq.s32.totalorder %s19, 3
      %p112 = scmp.ne.s32.totalorder %s107, %s109
      %p113 = scmp.eq.s32.totalorder %s19, 0
      %p114 = por %p112, %p113
      %p115 = scmp.ne.s32.totalorder %s107, %s109
      %p116 = scmp.eq.s32.totalorder %s24, 3
      %p117 = por %p115, %p116
      %p118 = scmp.ne.s32.totalorder %s109, %s110
      %p119 = scmp.eq.s32.totalorder %s24, 0
      %p120 = por %p118, %p119
      %p121 = scmp.ne.s32.totalorder %s109, %s110
      %p122 = scmp.eq.s32.totalorder %s25, 3
      %p123 = por %p121, %p122
      %p125 = scmp.ne.s32.totalorder %s110, %s124
      %p126 = scmp.eq.s32.totalorder %s25, 0
      %p127 = por %p125, %p126
      %s129 = sadd.s32 %s128, 1
      %p132 = scmp.eq.s32.totalorder %s19, 3
      %p133 = scmp.ne.s32.totalorder %s128, %s130
      %p134 = scmp.eq.s32.totalorder %s19, 0
      %p135 = por %p133, %p134
      %p136 = scmp.ne.s32.totalorder %s128, %s130
      %p137 = scmp.eq.s32.totalorder %s24, 3
      %p138 = por %p136, %p137
      %p139 = scmp.ne.s32.totalorder %s130, %s131
      %p140 = scmp.eq.s32.totalorder %s24, 0
      %p141 = por %p139, %p140
      %p142 = scmp.ne.s32.totalorder %s130, %s131
      %p143 = scmp.eq.s32.totalorder %s25, 3
      %p144 = por %p142, %p143
      %p146 = scmp.ne.s32.totalorder %s131, %s145
      %p147 = scmp.eq.s32.totalorder %s25, 0
      %p148 = por %p146, %p147
      %s149 = ssub.s32 %s26, %s38
      %s150 = ssub.s32 %s27, %s34
      %s151 = sor.u32 %s149, %s150
      %p152 = scmp.eq.s32.totalorder %s151, 0
      %s154 = sadd.s32 %s153, 1
      %s155 = scalar_select %p152, %s153, %s154
      %p158 = pneg %p152
      %p159 = scmp.eq.s32.totalorder %s19, 3
      %p160 = por %p158, %p159
      %p161 = scmp.ne.s32.totalorder %s153, %s156
      %p162 = scmp.eq.s32.totalorder %s19, 0
      %p163 = por %p161, %p162
      %p164 = scmp.ne.s32.totalorder %s153, %s156
      %p165 = scmp.eq.s32.totalorder %s24, 3
      %p166 = por %p164, %p165
      %p167 = scmp.ne.s32.totalorder %s156, %s157
      %p168 = scmp.eq.s32.totalorder %s24, 0
      %p169 = por %p167, %p168
      %p170 = scmp.ne.s32.totalorder %s156, %s157
      %p171 = scmp.eq.s32.totalorder %s25, 3
      %p172 = por %p170, %p171
      %p174 = scmp.ne.s32.totalorder %s157, %s173
      %p175 = scmp.eq.s32.totalorder %s25, 0
      %p176 = por %p174, %p175
      %p177 = scmp.le.s32.totalorder 1, %s19
      %p178 = scmp.lt.s32.totalorder %s19, 5
      %p179 = pnand %p177, %p178
      %p180 = pneg %p179
      // Predicated region
      $region9: #{tpu_custom_call.1} parent=5 // pred_check
        _
      $region10: #{tpu_custom_call.1} parent=5 // pred_check_branch
        %182 = sbr.rel (%p179) target = $region12
      $region11: #{tpu_custom_call.1} parent=5 // pred_region
        %s183 = ssub.s32 %s19, 1
        // Predicated region
        $region13: #{tpu_custom_call.1} parent=11 // pred_check
          %p184 = pneg %p78
        $region14: #{tpu_custom_call.1} parent=11 // pred_check_branch
          %186 = sbr.rel (%p184) target = $region16
        $region15: #{tpu_custom_call.1} parent=11 // pred_region
          %s188 = ssub.s32 256, 256
          %189 = vsyncadd [#allocation8], %s188
          %s190 = sshll.u32 [#allocation7], 4
          %s191 = int_to_ptr.vmem [resolvable:$true] %s190
          %196 = dma.hbm_to_vmem [thread:$0]  %s1, 256, %s191, [#allocation8], 64, 64, 4
        $region16: #{tpu_custom_call.1} parent=11 // pred_fallthru
          _
        // Predicated region
        $region17: #{tpu_custom_call.1} parent=11 // pred_check
          %p197 = pneg %p99
        $region18: #{tpu_custom_call.1} parent=11 // pred_check_branch
          %199 = sbr.rel (%p197) target = $region20
        $region19: #{tpu_custom_call.1} parent=11 // pred_region
          %s201 = ssub.s32 256, 256
          %202 = vsyncadd [#allocation8], %s201
          %s203 = sshll.u32 [#allocation9], 4
          %s204 = int_to_ptr.vmem [resolvable:$true] %s203
          %209 = dma.hbm_to_vmem [thread:$0]  %s2, 256, %s204, [#allocation8], 64, 64, 4
        $region20: #{tpu_custom_call.1} parent=11 // pred_fallthru
          _
        // Predicated region
        $region21: #{tpu_custom_call.1} parent=11 // pred_check
          %p210 = pneg %p120
        $region22: #{tpu_custom_call.1} parent=11 // pred_check_branch
          %212 = sbr.rel (%p210) target = $region24
        $region23: #{tpu_custom_call.1} parent=11 // pred_region
          %s214 = ssub.s32 256, 256
          %215 = vsyncadd [#allocation11], %s214
          %s216 = sshll.u32 [#allocation10], 4
          %s217 = int_to_ptr.vmem [resolvable:$true] %s216
          %222 = dma.hbm_to_vmem [thread:$0]  %s3, 256, %s217, [#allocation11], 64, 64, 4
        $region24: #{tpu_custom_call.1} parent=11 // pred_fallthru
          _
        // Predicated region
        $region25: #{tpu_custom_call.1} parent=11 // pred_check
          %p223 = pneg %p141
        $region26: #{tpu_custom_call.1} parent=11 // pred_check_branch
          %225 = sbr.rel (%p223) target = $region28
        $region27: #{tpu_custom_call.1} parent=11 // pred_region
          _
        $region28: #{tpu_custom_call.1} parent=11 // pred_fallthru
          _
      $region12: #{tpu_custom_call.1} parent=5 // pred_fallthru
        _
      %p226 = scmp.lt.s32.totalorder %s19, 4
      // Predicated region
      $region29: #{tpu_custom_call.1} parent=5 // pred_check
        %p227 = pneg %p226
      $region30: #{tpu_custom_call.1} parent=5 // pred_check_branch
        %229 = sbr.rel (%p227) target = $region32
      $region31: #{tpu_custom_call.1} parent=5 // pred_region
        // Predicated region
        $region33: #{tpu_custom_call.1} parent=31 // pred_check
          %p230 = pneg %p51
        $region34: #{tpu_custom_call.1} parent=31 // pred_check_branch
          %232 = sbr.rel (%p230) target = $region36
        $region35: #{tpu_custom_call.1} parent=31 // pred_region
          %s233 = sand.u32 %s41, 1
          %s234 = scalar_lea.sflag [#allocation5], %s233
          %s235 = sand.u32 %s41, 1
          %s236 = smul.addr %s235, 16
          %s237 = scalar_lea.vmem [#allocation4], %s236
          %s239 = ssub.s32 256, 256
          %240 = vsyncadd %s234, %s239
          %s241 = smul.addr %s26, 2
          %s242 = smul.addr %s241, 128
          %s243 = scalar_lea.hbm %s0, %s242
          %s244 = sshll.u32 %s237, 4
          %s245 = int_to_ptr.vmem [resolvable:$true] %s244
          %250 = dma.hbm_to_vmem [thread:$0]  %s243, 256, %s245, %s234, 128, 128, 8
        $region36: #{tpu_custom_call.1} parent=31 // pred_fallthru
          _
      $region32: #{tpu_custom_call.1} parent=5 // pred_fallthru
        _
      %p251 = scmp.le.s32.totalorder 1, %s19
      %p252 = scmp.lt.s32.totalorder %s19, 5
      %p253 = pnand %p251, %p252
      %p254 = pneg %p253
      // Predicated region
      $region37: #{tpu_custom_call.1} parent=5 // pred_check
        _
      $region38: #{tpu_custom_call.1} parent=5 // pred_check_branch
        %256 = sbr.rel (%p253) target = $region40
      $region39: #{tpu_custom_call.1} parent=5 // pred_region
        %s257 = ssub.s32 %s19, 1
        %s258 = sand.u32 %s44, 1
        %s259 = scalar_lea.sflag [#allocation5], %s258
        %s260 = sand.u32 %s44, 1
        %s261 = smul.addr %s260, 16
        %s262 = scalar_lea.vmem [#allocation4], %s261
        // Predicated region
        $region41: #{tpu_custom_call.1} parent=39 // pred_check
          %p263 = pneg %p57
        $region42: #{tpu_custom_call.1} parent=39 // pred_check_branch
          %265 = sbr.rel (%p263) target = $region44
        $region43: #{tpu_custom_call.1} parent=39 // pred_region
          %266 = dma.done %s259, 256
        $region44: #{tpu_custom_call.1} parent=39 // pred_fallthru
          _
        // Predicated region
        $region45: #{tpu_custom_call.1} parent=39 // pred_check
          %p267 = pneg %p78
        $region46: #{tpu_custom_call.1} parent=39 // pred_check_branch
          %269 = sbr.rel (%p267) target = $region48
        $region47: #{tpu_custom_call.1} parent=39 // pred_region
          %270 = dma.done [#allocation8], 256
        $region48: #{tpu_custom_call.1} parent=39 // pred_fallthru
          _
        // Predicated region
        $region49: #{tpu_custom_call.1} parent=39 // pred_check
          %p271 = pneg %p99
        $region50: #{tpu_custom_call.1} parent=39 // pred_check_branch
          %273 = sbr.rel (%p271) target = $region52
        $region51: #{tpu_custom_call.1} parent=39 // pred_region
          %274 = dma.done [#allocation8], 256
        $region52: #{tpu_custom_call.1} parent=39 // pred_fallthru
          _
        // Predicated region
        $region53: #{tpu_custom_call.1} parent=39 // pred_check
          %p275 = pneg %p120
        $region54: #{tpu_custom_call.1} parent=39 // pred_check_branch
          %277 = sbr.rel (%p275) target = $region56
        $region55: #{tpu_custom_call.1} parent=39 // pred_region
          %278 = dma.done [#allocation11], 256
        $region56: #{tpu_custom_call.1} parent=39 // pred_fallthru
          _
        %s279 = sand.u32 %s44, 1
        %s280 = scalar_lea.sflag [#allocation5], %s279
        %s281 = sand.u32 %s44, 1
        %s282 = smul.addr %s281, 16
        %s283 = scalar_lea.vmem [#allocation4], %s282
        %p284 = pneg %p57
        %p285 = pneg %p54
        %p286 = pneg %p78
        %p287 = pneg %p75
        %p288 = pneg %p99
        %p289 = pneg %p96
        %p290 = pneg %p120
        %p291 = pneg %p117
        %p292 = pneg %p141
        %p293 = pneg %p138
        %p294 = pneg %p169
        %p295 = pneg %p166
        %s296 = sand.u32 %s156, 1
        %s297 = scalar_lea.sflag [#allocation6], %s296
        %s298 = sand.u32 %s156, 1
        %s299 = smul.addr %s298, 8
        %s300 = scalar_lea.vmem [#allocation12], %s299
        %p302 = scmp.eq.s32.totalorder %s29, 0
        // Predicated region
        $region57: #{tpu_custom_call.1} parent=39 // pred_check
          %p303 = pneg %p302
        $region58: #{tpu_custom_call.1} parent=39 // pred_check_branch
          %305 = sbr.rel (%p303) target = $region60
        $region59: #{tpu_custom_call.1} parent=39 // pred_region
          %v306 = vld [vmem:[%s262] sm:$0xff]
          %v307 = vld [vmem:[%s262 + $0x8] sm:$0xff]
          %v308 = vpack.c.bf16 %v307, %v306
          %v309 = vld [vmem:[#allocation9] sm:$0xf]
          %v310 = vld [vmem:[#allocation9 + $0x4] sm:$0xf]
          %v311 = vld [vmem:[#allocation9 + $0x8] sm:$0xf]
          %v312 = vld [vmem:[#allocation9 + $0xc] sm:$0xf]
          %v317 = vunpack.c.l.b16 %v309
          %v318 = vunpack.c.l.b16 %v310
          %v319 = vunpack.c.l.b16 %v311
          %v320 = vunpack.c.l.b16 %v312
          %v321 = vpack.c.b16 %v318, %v317
          %v322 = vpack.c.b16 %v320, %v319
          %vm325 = vcmask 261120
          %v327 = vsel %vm325, %v308, 0
          %329 = vmatprep.subr.bf16.mxu0 0
          %330 = vmatpush1.bf16.msra.mxu0 0
          %331 = vmatprep.subr.bf16.mxu0 0
          %332 = vmatpush1.bf16.msra.mxu0 0
          %333 = vmatprep.subr.bf16.mxu0 0
          %334 = vmatpush1.bf16.msra.mxu0 0
          %335 = vmatprep.subr.bf16.mxu0 0
          %336 = vmatpush1.bf16.msra.mxu0 0
          %337 = vmatprep.subr.bf16.mxu0 0
          %338 = vmatpush1.bf16.msra.mxu0 0
          %339 = vmatprep.subr.bf16.mxu0 0
          %340 = vmatpush1.bf16.msra.mxu0 0
          %341 = vmatprep.subr.bf16.mxu0 0
          %342 = vmatpush1.bf16.msra.mxu0 %v322
          %343 = vmatprep.subr.bf16.mxu0 0
          %344 = vmatpush1.bf16.msra.mxu0 %v321
          %345 = vmatprep.subr.bf16.mxu0 0
          %346 = vmatpush2.bf16.msra.mxu0 0
          %347 = vmatprep.subr.bf16.mxu0 0
          %348 = vmatpush2.bf16.msra.mxu0 0
          %349 = vmatprep.subr.bf16.mxu0 0
          %350 = vmatpush2.bf16.msra.mxu0 0
          %351 = vmatprep.subr.bf16.mxu0 0
          %352 = vmatpush2.bf16.msra.mxu0 0
          %353 = vmatprep.subr.bf16.mxu0 0
          %354 = vmatpush2.bf16.msra.mxu0 0
          %355 = vmatprep.subr.bf16.mxu0 0
          %356 = vmatpush2.bf16.msra.mxu0 0
          %357 = vmatprep.subr.bf16.mxu0 0
          %358 = vmatpush2.bf16.msra.mxu0 0
          %359 = vmatprep.subr.bf16.mxu0 0
          %360 = vmatpush2.bf16.msra.mxu0 0
          %361 = vmatprep.mubr.bf16.mxu0 0
          %362 = vmatmul.mubr.bf16.gmra.mxu0 %v327
          %v363 = vpop.f32.mrf.mxu0
          %v364 = vadd.f32 0.0, %v363
          %v365 = vpop.f32.mrf.mxu0
          %v366 = vpop.f32.mrf.mxu0
          %v367 = vadd.f32 0.0, %v366
          %v368 = vpop.f32.mrf.mxu0
          %369 = vdwg.mxu0
          %v370 = vpack.c.bf16 %v367, %v364
          %v372 = vunpack.c.l.b16 %v370
          %v373 = vunpack.c.h.b16 %v370
          %v374 = vpack.c.b16 %v372, %v372
          %v375 = vpack.c.b16 %v373, %v373
          %vm378 = vcmask 519168
          %379 = vst.msk [vmem:[#allocation2] sm:$0xf] %vm378, %v374
          %380 = vst.msk [vmem:[#allocation2 + $0x4] sm:$0xf] %vm378, %v375
        $region60: #{tpu_custom_call.1} parent=39 // pred_fallthru
          _
        %s381 = smul.u32 %s29, 8
        %s382 = scalar_lea.vmem %s262, %s381 [#allocation4]
        %v383 = vld [vmem:[%s382] sm:$0xff]
        %v384 = vpack.c.bf16 %v383, %v383
        %v385 = vld [vmem:[#allocation7] sm:$0xf]
        %v386 = vld [vmem:[#allocation7 + $0x4] sm:$0xf]
        %v387 = vld [vmem:[#allocation7 + $0x8] sm:$0xf]
        %v388 = vld [vmem:[#allocation7 + $0xc] sm:$0xf]
        %v393 = vunpack.c.l.b16 %v385
        %v394 = vunpack.c.l.b16 %v386
        %v395 = vunpack.c.l.b16 %v387
        %v396 = vunpack.c.l.b16 %v388
        %v397 = vpack.c.b16 %v394, %v393
        %v398 = vpack.c.b16 %v396, %v395
        %vm401 = vcmask 261120
        %v403 = vsel %vm401, %v384, 0
        %405 = vmatprep.subr.bf16.mxu0 0
        %406 = vmatpush1.bf16.msra.mxu0 0
        %407 = vmatprep.subr.bf16.mxu0 0
        %408 = vmatpush1.bf16.msra.mxu0 0
        %409 = vmatprep.subr.bf16.mxu0 0
        %410 = vmatpush1.bf16.msra.mxu0 0
        %411 = vmatprep.subr.bf16.mxu0 0
        %412 = vmatpush1.bf16.msra.mxu0 0
        %413 = vmatprep.subr.bf16.mxu0 0
        %414 = vmatpush1.bf16.msra.mxu0 0
        %415 = vmatprep.subr.bf16.mxu0 0
        %416 = vmatpush1.bf16.msra.mxu0 0
        %417 = vmatprep.subr.bf16.mxu0 0
        %418 = vmatpush1.bf16.msra.mxu0 %v398
        %419 = vmatprep.subr.bf16.mxu0 0
        %420 = vmatpush1.bf16.msra.mxu0 %v397
        %421 = vmatprep.subr.bf16.mxu0 0
        %422 = vmatpush2.bf16.msra.mxu0 0
        %423 = vmatprep.subr.bf16.mxu0 0
        %424 = vmatpush2.bf16.msra.mxu0 0
        %425 = vmatprep.subr.bf16.mxu0 0
        %426 = vmatpush2.bf16.msra.mxu0 0
        %427 = vmatprep.subr.bf16.mxu0 0
        %428 = vmatpush2.bf16.msra.mxu0 0
        %429 = vmatprep.subr.bf16.mxu0 0
        %430 = vmatpush2.bf16.msra.mxu0 0
        %431 = vmatprep.subr.bf16.mxu0 0
        %432 = vmatpush2.bf16.msra.mxu0 0
        %433 = vmatprep.subr.bf16.mxu0 0
        %434 = vmatpush2.bf16.msra.mxu0 0
        %435 = vmatprep.subr.bf16.mxu0 0
        %436 = vmatpush2.bf16.msra.mxu0 0
        %437 = vmatprep.mubr.bf16.mxu0 0
        %438 = vmatmul.mubr.bf16.gmra.mxu0 %v403
        %v439 = vpop.f32.mrf.mxu0
        %v440 = vadd.f32 0.0, %v439
        %v441 = vpop.f32.mrf.mxu0
        %v442 = vpop.f32.mrf.mxu0
        %v443 = vpop.f32.mrf.mxu0
        %444 = vdwg.mxu0
        %v445 = vpack.c.bf16 %v440, %v440
        %v446 = vlaneseq
        %v447 = vshrl.u32 %v446, 7
        %v448 = vstv %s381
        %v449 = vadd.s32 %v448, %v447
        %s450 = sadd.s32 %s29, 1
        // While loop
        $region61: #{tpu_custom_call.1} parent=39 // loop_pre_header
          _
        $region62: #{tpu_custom_call.1} parent=39 // loop_header
          %s452 = sphi 0, %s454
          %p453 = scmp.ge.s32.totalorder %s452, %s450
          %v457 = vphi -1e+30, %v522
          %v458 = vphi 0.0, %v533
          %v459 = vphi 0.0, %v588
        $region63: #{tpu_custom_call.1} parent=39 // loop_header_branch
          %456 = sbr.rel (%p453) target = $region67
        $region64: #{tpu_custom_call.1} parent=39 // loop_body
          %s460 = smul.u32 %s452, 8
          %s461 = sshra.s32 %s460, 3
          %s462 = sand.u32 %s460, 7
          %s463 = smul.addr %s461, 4
          %s464 = scalar_lea.vmem [#allocation2], %s463
          %v465 = vld [vmem:[%s464] sm:$0xf]
          %vm466 = vcmask 64512
          %v468 = vsel %vm466, %v445, 0
          %v471 = vsel %vm466, %v465, 0
          %473 = vmatprep.subr.bf16.mxu0 0
          %474 = vmatpush1.bf16.xpose.msra.mxu0 0
          %475 = vmatprep.subr.bf16.mxu0 0
          %476 = vmatpush1.bf16.xpose.msra.mxu0 0
          %477 = vmatprep.subr.bf16.mxu0 0
          %478 = vmatpush1.bf16.xpose.msra.mxu0 0
          %479 = vmatprep.subr.bf16.mxu0 0
          %480 = vmatpush1.bf16.xpose.msra.mxu0 0
          %481 = vmatprep.subr.bf16.mxu0 0
          %482 = vmatpush1.bf16.xpose.msra.mxu0 0
          %483 = vmatprep.subr.bf16.mxu0 0
          %484 = vmatpush1.bf16.xpose.msra.mxu0 0
          %485 = vmatprep.subr.bf16.mxu0 0
          %486 = vmatpush1.bf16.xpose.msra.mxu0 0
          %487 = vmatprep.subr.bf16.mxu0 0
          %488 = vmatpush1.bf16.xpose.msra.mxu0 %v471
          %489 = vmatprep.subr.bf16.mxu0 0
          %490 = vmatpush2.bf16.xpose.msra.mxu0 0
          %491 = vmatprep.subr.bf16.mxu0 0
          %492 = vmatpush2.bf16.xpose.msra.mxu0 0
          %493 = vmatprep.subr.bf16.mxu0 0
          %494 = vmatpush2.bf16.xpose.msra.mxu0 0
          %495 = vmatprep.subr.bf16.mxu0 0
          %496 = vmatpush2.bf16.xpose.msra.mxu0 0
          %497 = vmatprep.subr.bf16.mxu0 0
          %498 = vmatpush2.bf16.xpose.msra.mxu0 0
          %499 = vmatprep.subr.bf16.mxu0 0
          %500 = vmatpush2.bf16.xpose.msra.mxu0 0
          %501 = vmatprep.subr.bf16.mxu0 0
          %502 = vmatpush2.bf16.xpose.msra.mxu0 0
          %503 = vmatprep.subr.bf16.mxu0 0
          %504 = vmatpush2.bf16.xpose.msra.mxu0 0
          %505 = vmatprep.mubr.bf16.mxu0 0
          %506 = vmatmul.mubr.bf16.gmra.mxu0 %v468
          %v507 = vpop.f32.mrf.mxu0
          %v508 = vadd.f32 0.0, %v507
          %v509 = vpop.f32.mrf.mxu0
          %v510 = vpop.f32.mrf.mxu0
          %v511 = vpop.f32.mrf.mxu0
          %512 = vdwg.mxu0
          %v513 = vlaneseq
          %v514 = vand.u32 %v513, 127
          %v515 = vstv %s460
          %v516 = vadd.s32 %v515, %v514
          %vm517 = vcmp.gt.s32.totalorder %v516, %v449
          %v518 = vsel %vm517, -1e+30, %v508
          %v519 = vsel %vm466, %v518, -inf
          %520 = vmax.xlane.f32.xlu0 %v519
          %v521 = vpop.xlane.xlu0 %520
          %v522 = vmax.f32 %v457, %v521
          %v523 = vsub.f32 %v457, %v522
          %v524 = vmul.f32 %v523, 1.442695
          %v525 = vpow.pop %v524
          %v526 = vsub.f32 %v518, %v522
          %v527 = vmul.f32 %v526, 1.442695
          %v528 = vpow.pop %v527
          %v529 = vmul.f32 %v525, %v458
          %v530 = vsel %vm466, %v528, 0.0
          %531 = vadd.xlane.f32.xlu0 %v530
          %v532 = vpop.xlane.xlu0 %531
          %v533 = vadd.f32 %v529, %v532
          %v534 = vmul.f32 %v525, %v459
          %v535 = vpack.c.bf16 %v528, %v528
          %v537 = vunpack.c.l.b16 %v465
          %v538 = vpack.c.b16 %v537, %v537
          %539 = vrot.lane.b32.xlu0 %v538, 96
          %v540 = vpop.permute.xlu0 %539
          %v542 = vsel %vm466, %v535, 0
          %vm544 = vcmask 1043456
          %v546 = vsel %vm544, %v540, 0
          %548 = vmatprep.subr.bf16.mxu0 0
          %549 = vmatpush1.bf16.msra.mxu0 0
          %550 = vmatprep.subr.bf16.mxu0 0
          %551 = vmatpush1.bf16.msra.mxu0 0
          %552 = vmatprep.subr.bf16.mxu0 0
          %553 = vmatpush1.bf16.msra.mxu0 0
          %554 = vmatprep.subr.bf16.mxu0 0
          %555 = vmatpush1.bf16.msra.mxu0 0
          %556 = vmatprep.subr.bf16.mxu0 0
          %557 = vmatpush1.bf16.msra.mxu0 0
          %558 = vmatprep.subr.bf16.mxu0 0
          %559 = vmatpush1.bf16.msra.mxu0 0
          %560 = vmatprep.subr.bf16.mxu0 0
          %561 = vmatpush1.bf16.msra.mxu0 0
          %562 = vmatprep.subr.bf16.mxu0 0
          %563 = vmatpush1.bf16.msra.mxu0 %v546
          %564 = vmatprep.subr.bf16.mxu0 0
          %565 = vmatpush2.bf16.msra.mxu0 0
          %566 = vmatprep.subr.bf16.mxu0 0
          %567 = vmatpush2.bf16.msra.mxu0 0
          %568 = vmatprep.subr.bf16.mxu0 0
          %569 = vmatpush2.bf16.msra.mxu0 0
          %570 = vmatprep.subr.bf16.mxu0 0
          %571 = vmatpush2.bf16.msra.mxu0 0
          %572 = vmatprep.subr.bf16.mxu0 0
          %573 = vmatpush2.bf16.msra.mxu0 0
          %574 = vmatprep.subr.bf16.mxu0 0
          %575 = vmatpush2.bf16.msra.mxu0 0
          %576 = vmatprep.subr.bf16.mxu0 0
          %577 = vmatpush2.bf16.msra.mxu0 0
          %578 = vmatprep.subr.bf16.mxu0 0
          %579 = vmatpush2.bf16.msra.mxu0 0
          %580 = vmatprep.mubr.bf16.mxu0 0
          %581 = vmatmul.mubr.bf16.gmra.mxu0 %v542
          %v582 = vpop.f32.mrf.mxu0
          %v583 = vadd.f32 0.0, %v582
          %v584 = vpop.f32.mrf.mxu0
          %v585 = vpop.f32.mrf.mxu0
          %v586 = vpop.f32.mrf.mxu0
          %587 = vdwg.mxu0
          %v588 = vadd.f32 %v534, %v583
        $region65: #{tpu_custom_call.1} parent=39 // loop_footer
          %s454 = sadd.s32 %s452, 1
        $region66: #{tpu_custom_call.1} parent=39 // loop_footer_branch
          %451 = sbr.rel target = $region62
        $region67: #{tpu_custom_call.1} parent=39 // loop_exit
          _
        %v589 = vrcp.pop %v458
        %v590 = vmul.f32 %v459, %v589
        %vm591 = vcmask 64512
        %592 = vst.msk [vmem:[#allocation3] sm:$0xff] %vm591, %v590
        // While loop
        $region68: #{tpu_custom_call.1} parent=39 // loop_pre_header
          _
        $region69: #{tpu_custom_call.1} parent=39 // loop_header
          %s594 = sphi 0, %s596
          %p595 = scmp.ge.s32.totalorder %s594, %s450
          %v599 = vphi -1e+30, %v671
          %v600 = vphi 0.0, %v682
          %v601 = vphi 0.0, %v734
        $region70: #{tpu_custom_call.1} parent=39 // loop_header_branch
          %598 = sbr.rel (%p595) target = $region74
        $region71: #{tpu_custom_call.1} parent=39 // loop_body
          %s602 = smul.u32 %s594, 8
          %s603 = sshra.s32 %s602, 3
          %s604 = sand.u32 %s602, 7
          %s605 = smul.addr %s603, 4
          %s606 = scalar_lea.vmem [#allocation2], %s605
          %v607 = vld [vmem:[%s606] sm:$0xf]
          %609 = vrot.lane.b32.xlu0 %v445, 120
          %v610 = vpop.permute.xlu0 %609
          %v612 = vunpack.c.l.b16 %v607
          %v613 = vpack.c.b16 %v612, %v612
          %614 = vrot.lane.b32.xlu0 %v613, 120
          %v615 = vpop.permute.xlu0 %614
          %v617 = vsel %vm591, %v610, 0
          %v620 = vsel %vm591, %v615, 0
          %622 = vmatprep.subr.bf16.mxu0 0
          %623 = vmatpush1.bf16.xpose.msra.mxu0 0
          %624 = vmatprep.subr.bf16.mxu0 0
          %625 = vmatpush1.bf16.xpose.msra.mxu0 0
          %626 = vmatprep.subr.bf16.mxu0 0
          %627 = vmatpush1.bf16.xpose.msra.mxu0 0
          %628 = vmatprep.subr.bf16.mxu0 0
          %629 = vmatpush1.bf16.xpose.msra.mxu0 0
          %630 = vmatprep.subr.bf16.mxu0 0
          %631 = vmatpush1.bf16.xpose.msra.mxu0 0
          %632 = vmatprep.subr.bf16.mxu0 0
          %633 = vmatpush1.bf16.xpose.msra.mxu0 0
          %634 = vmatprep.subr.bf16.mxu0 0
          %635 = vmatpush1.bf16.xpose.msra.mxu0 0
          %636 = vmatprep.subr.bf16.mxu0 0
          %637 = vmatpush1.bf16.xpose.msra.mxu0 %v620
          %638 = vmatprep.subr.bf16.mxu0 0
          %639 = vmatpush2.bf16.xpose.msra.mxu0 0
          %640 = vmatprep.subr.bf16.mxu0 0
          %641 = vmatpush2.bf16.xpose.msra.mxu0 0
          %642 = vmatprep.subr.bf16.mxu0 0
          %643 = vmatpush2.bf16.xpose.msra.mxu0 0
          %644 = vmatprep.subr.bf16.mxu0 0
          %645 = vmatpush2.bf16.xpose.msra.mxu0 0
          %646 = vmatprep.subr.bf16.mxu0 0
          %647 = vmatpush2.bf16.xpose.msra.mxu0 0
          %648 = vmatprep.subr.bf16.mxu0 0
          %649 = vmatpush2.bf16.xpose.msra.mxu0 0
          %650 = vmatprep.subr.bf16.mxu0 0
          %651 = vmatpush2.bf16.xpose.msra.mxu0 0
          %652 = vmatprep.subr.bf16.mxu0 0
          %653 = vmatpush2.bf16.xpose.msra.mxu0 0
          %654 = vmatprep.mubr.bf16.mxu0 0
          %655 = vmatmul.mubr.bf16.gmra.mxu0 %v617
          %v656 = vpop.f32.mrf.mxu0
          %v657 = vadd.f32 0.0, %v656
          %v658 = vpop.f32.mrf.mxu0
          %v659 = vpop.f32.mrf.mxu0
          %v660 = vpop.f32.mrf.mxu0
          %661 = vdwg.mxu0
          %v662 = vlaneseq
          %v663 = vand.u32 %v662, 127
          %v664 = vstv %s602
          %v665 = vadd.s32 %v664, %v663
          %vm666 = vcmp.gt.s32.totalorder %v665, %v449
          %v667 = vsel %vm666, -1e+30, %v657
          %v668 = vsel %vm591, %v667, -inf
          %669 = vmax.xlane.f32.xlu0 %v668
          %v670 = vpop.xlane.xlu0 %669
          %v671 = vmax.f32 %v599, %v670
          %v672 = vsub.f32 %v599, %v671
          %v673 = vmul.f32 %v672, 1.442695
          %v674 = vpow.pop %v673
          %v675 = vsub.f32 %v667, %v671
          %v676 = vmul.f32 %v675, 1.442695
          %v677 = vpow.pop %v676
          %v678 = vmul.f32 %v674, %v600
          %v679 = vsel %vm591, %v677, 0.0
          %680 = vadd.xlane.f32.xlu0 %v679
          %v681 = vpop.xlane.xlu0 %680
          %v682 = vadd.f32 %v678, %v681
          %v683 = vmul.f32 %v674, %v601
          %v684 = vpack.c.bf16 %v677, %v677
          %685 = vrot.lane.b32.xlu0 %v613, 88
          %v686 = vpop.permute.xlu0 %685
          %v688 = vsel %vm591, %v684, 0
          %vm690 = vcmask 1043456
          %v692 = vsel %vm690, %v686, 0
          %694 = vmatprep.subr.bf16.mxu0 0
          %695 = vmatpush1.bf16.msra.mxu0 0
          %696 = vmatprep.subr.bf16.mxu0 0
          %697 = vmatpush1.bf16.msra.mxu0 0
          %698 = vmatprep.subr.bf16.mxu0 0
          %699 = vmatpush1.bf16.msra.mxu0 0
          %700 = vmatprep.subr.bf16.mxu0 0
          %701 = vmatpush1.bf16.msra.mxu0 0
          %702 = vmatprep.subr.bf16.mxu0 0
          %703 = vmatpush1.bf16.msra.mxu0 0
          %704 = vmatprep.subr.bf16.mxu0 0
          %705 = vmatpush1.bf16.msra.mxu0 0
          %706 = vmatprep.subr.bf16.mxu0 0
          %707 = vmatpush1.bf16.msra.mxu0 0
          %708 = vmatprep.subr.bf16.mxu0 0
          %709 = vmatpush1.bf16.msra.mxu0 %v692
          %710 = vmatprep.subr.bf16.mxu0 0
          %711 = vmatpush2.bf16.msra.mxu0 0
          %712 = vmatprep.subr.bf16.mxu0 0
          %713 = vmatpush2.bf16.msra.mxu0 0
          %714 = vmatprep.subr.bf16.mxu0 0
          %715 = vmatpush2.bf16.msra.mxu0 0
          %716 = vmatprep.subr.bf16.mxu0 0
          %717 = vmatpush2.bf16.msra.mxu0 0
          %718 = vmatprep.subr.bf16.mxu0 0
          %719 = vmatpush2.bf16.msra.mxu0 0
          %720 = vmatprep.subr.bf16.mxu0 0
          %721 = vmatpush2.bf16.msra.mxu0 0
          %722 = vmatprep.subr.bf16.mxu0 0
          %723 = vmatpush2.bf16.msra.mxu0 0
          %724 = vmatprep.subr.bf16.mxu0 0
          %725 = vmatpush2.bf16.msra.mxu0 0
          %726 = vmatprep.mubr.bf16.mxu0 0
          %727 = vmatmul.mubr.bf16.gmra.mxu0 %v688
          %v728 = vpop.f32.mrf.mxu0
          %v729 = vadd.f32 0.0, %v728
          %v730 = vpop.f32.mrf.mxu0
          %v731 = vpop.f32.mrf.mxu0
          %v732 = vpop.f32.mrf.mxu0
          %733 = vdwg.mxu0
          %v734 = vadd.f32 %v683, %v729
        $region72: #{tpu_custom_call.1} parent=39 // loop_footer
          %s596 = sadd.s32 %s594, 1
        $region73: #{tpu_custom_call.1} parent=39 // loop_footer_branch
          %593 = sbr.rel target = $region69
        $region74: #{tpu_custom_call.1} parent=39 // loop_exit
          _
        %v735 = vrcp.pop %v600
        %v736 = vmul.f32 %v601, %v735
        %738 = vrot.lane.b32.xlu0 %v736, 8
        %v739 = vpop.permute.xlu0 %738
        %vm741 = vcmask 130112
        %742 = vst.msk [vmem:[#allocation3] sm:$0xff] %vm741, %v739
        // While loop
        $region75: #{tpu_custom_call.1} parent=39 // loop_pre_header
          _
        $region76: #{tpu_custom_call.1} parent=39 // loop_header
          %s744 = sphi 0, %s746
          %p745 = scmp.ge.s32.totalorder %s744, %s450
          %v749 = vphi -1e+30, %v821
          %v750 = vphi 0.0, %v832
          %v751 = vphi 0.0, %v884
        $region77: #{tpu_custom_call.1} parent=39 // loop_header_branch
          %748 = sbr.rel (%p745) target = $region81
        $region78: #{tpu_custom_call.1} parent=39 // loop_body
          %s752 = smul.u32 %s744, 8
          %s753 = sshra.s32 %s752, 3
          %s754 = sand.u32 %s752, 7
          %s755 = smul.addr %s753, 4
          %s756 = scalar_lea.vmem [#allocation2], %s755
          %v757 = vld [vmem:[%s756] sm:$0xf]
          %759 = vrot.lane.b32.xlu0 %v445, 112
          %v760 = vpop.permute.xlu0 %759
          %v762 = vunpack.c.l.b16 %v757
          %v763 = vpack.c.b16 %v762, %v762
          %764 = vrot.lane.b32.xlu0 %v763, 112
          %v765 = vpop.permute.xlu0 %764
          %v767 = vsel %vm591, %v760, 0
          %v770 = vsel %vm591, %v765, 0
          %772 = vmatprep.subr.bf16.mxu0 0
          %773 = vmatpush1.bf16.xpose.msra.mxu0 0
          %774 = vmatprep.subr.bf16.mxu0 0
          %775 = vmatpush1.bf16.xpose.msra.mxu0 0
          %776 = vmatprep.subr.bf16.mxu0 0
          %777 = vmatpush1.bf16.xpose.msra.mxu0 0
          %778 = vmatprep.subr.bf16.mxu0 0
          %779 = vmatpush1.bf16.xpose.msra.mxu0 0
          %780 = vmatprep.subr.bf16.mxu0 0
          %781 = vmatpush1.bf16.xpose.msra.mxu0 0
          %782 = vmatprep.subr.bf16.mxu0 0
          %783 = vmatpush1.bf16.xpose.msra.mxu0 0
          %784 = vmatprep.subr.bf16.mxu0 0
          %785 = vmatpush1.bf16.xpose.msra.mxu0 0
          %786 = vmatprep.subr.bf16.mxu0 0
          %787 = vmatpush1.bf16.xpose.msra.mxu0 %v770
          %788 = vmatprep.subr.bf16.mxu0 0
          %789 = vmatpush2.bf16.xpose.msra.mxu0 0
          %790 = vmatprep.subr.bf16.mxu0 0
          %791 = vmatpush2.bf16.xpose.msra.mxu0 0
          %792 = vmatprep.subr.bf16.mxu0 0
          %793 = vmatpush2.bf16.xpose.msra.mxu0 0
          %794 = vmatprep.subr.bf16.mxu0 0
          %795 = vmatpush2.bf16.xpose.msra.mxu0 0
          %796 = vmatprep.subr.bf16.mxu0 0
          %797 = vmatpush2.bf16.xpose.msra.mxu0 0
          %798 = vmatprep.subr.bf16.mxu0 0
          %799 = vmatpush2.bf16.xpose.msra.mxu0 0
          %800 = vmatprep.subr.bf16.mxu0 0
          %801 = vmatpush2.bf16.xpose.msra.mxu0 0
          %802 = vmatprep.subr.bf16.mxu0 0
          %803 = vmatpush2.bf16.xpose.msra.mxu0 0
          %804 = vmatprep.mubr.bf16.mxu0 0
          %805 = vmatmul.mubr.bf16.gmra.mxu0 %v767
          %v806 = vpop.f32.mrf.mxu0
          %v807 = vadd.f32 0.0, %v806
          %v808 = vpop.f32.mrf.mxu0
          %v809 = vpop.f32.mrf.mxu0
          %v810 = vpop.f32.mrf.mxu0
          %811 = vdwg.mxu0
          %v812 = vlaneseq
          %v813 = vand.u32 %v812, 127
          %v814 = vstv %s752
          %v815 = vadd.s32 %v814, %v813
          %vm816 = vcmp.gt.s32.totalorder %v815, %v449
          %v817 = vsel %vm816, -1e+30, %v807
          %v818 = vsel %vm591, %v817, -inf
          %819 = vmax.xlane.f32.xlu0 %v818
          %v820 = vpop.xlane.xlu0 %819
          %v821 = vmax.f32 %v749, %v820
          %v822 = vsub.f32 %v749, %v821
          %v823 = vmul.f32 %v822, 1.442695
          %v824 = vpow.pop %v823
          %v825 = vsub.f32 %v817, %v821
          %v826 = vmul.f32 %v825, 1.442695
          %v827 = vpow.pop %v826
          %v828 = vmul.f32 %v824, %v750
          %v829 = vsel %vm591, %v827, 0.0
          %830 = vadd.xlane.f32.xlu0 %v829
          %v831 = vpop.xlane.xlu0 %830
          %v832 = vadd.f32 %v828, %v831
          %v833 = vmul.f32 %v824, %v751
          %v834 = vpack.c.bf16 %v827, %v827
          %835 = vrot.lane.b32.xlu0 %v763, 80
          %v836 = vpop.permute.xlu0 %835
          %v838 = vsel %vm591, %v834, 0
          %vm840 = vcmask 1043456
          %v842 = vsel %vm840, %v836, 0
          %844 = vmatprep.subr.bf16.mxu0 0
          %845 = vmatpush1.bf16.msra.mxu0 0
          %846 = vmatprep.subr.bf16.mxu0 0
          %847 = vmatpush1.bf16.msra.mxu0 0
          %848 = vmatprep.subr.bf16.mxu0 0
          %849 = vmatpush1.bf16.msra.mxu0 0
          %850 = vmatprep.subr.bf16.mxu0 0
          %851 = vmatpush1.bf16.msra.mxu0 0
          %852 = vmatprep.subr.bf16.mxu0 0
          %853 = vmatpush1.bf16.msra.mxu0 0
          %854 = vmatprep.subr.bf16.mxu0 0
          %855 = vmatpush1.bf16.msra.mxu0 0
          %856 = vmatprep.subr.bf16.mxu0 0
          %857 = vmatpush1.bf16.msra.mxu0 0
          %858 = vmatprep.subr.bf16.mxu0 0
          %859 = vmatpush1.bf16.msra.mxu0 %v842
          %860 = vmatprep.subr.bf16.mxu0 0
          %861 = vmatpush2.bf16.msra.mxu0 0
          %862 = vmatprep.subr.bf16.mxu0 0
          %863 = vmatpush2.bf16.msra.mxu0 0
          %864 = vmatprep.subr.bf16.mxu0 0
          %865 = vmatpush2.bf16.msra.mxu0 0
          %866 = vmatprep.subr.bf16.mxu0 0
          %867 = vmatpush2.bf16.msra.mxu0 0
          %868 = vmatprep.subr.bf16.mxu0 0
          %869 = vmatpush2.bf16.msra.mxu0 0
          %870 = vmatprep.subr.bf16.mxu0 0
          %871 = vmatpush2.bf16.msra.mxu0 0
          %872 = vmatprep.subr.bf16.mxu0 0
          %873 = vmatpush2.bf16.msra.mxu0 0
          %874 = vmatprep.subr.bf16.mxu0 0
          %875 = vmatpush2.bf16.msra.mxu0 0
          %876 = vmatprep.mubr.bf16.mxu0 0
          %877 = vmatmul.mubr.bf16.gmra.mxu0 %v838
          %v878 = vpop.f32.mrf.mxu0
          %v879 = vadd.f32 0.0, %v878
          %v880 = vpop.f32.mrf.mxu0
          %v881 = vpop.f32.mrf.mxu0
          %v882 = vpop.f32.mrf.mxu0
          %883 = vdwg.mxu0
          %v884 = vadd.f32 %v833, %v879
        $region79: #{tpu_custom_call.1} parent=39 // loop_footer
          %s746 = sadd.s32 %s744, 1
        $region80: #{tpu_custom_call.1} parent=39 // loop_footer_branch
          %743 = sbr.rel target = $region76
        $region81: #{tpu_custom_call.1} parent=39 // loop_exit
          _
        %v885 = vrcp.pop %v750
        %v886 = vmul.f32 %v751, %v885
        %888 = vrot.lane.b32.xlu0 %v886, 16
        %v889 = vpop.permute.xlu0 %888
        %vm891 = vcmask 195712
        %892 = vst.msk [vmem:[#allocation3] sm:$0xff] %vm891, %v889
        // While loop
        $region82: #{tpu_custom_call.1} parent=39 // loop_pre_header
          _
        $region83: #{tpu_custom_call.1} parent=39 // loop_header
          %s894 = sphi 0, %s896
          %p895 = scmp.ge.s32.totalorder %s894, %s450
          %v899 = vphi -1e+30, %v971
          %v900 = vphi 0.0, %v982
          %v901 = vphi 0.0, %v1034
        $region84: #{tpu_custom_call.1} parent=39 // loop_header_branch
          %898 = sbr.rel (%p895) target = $region88
        $region85: #{tpu_custom_call.1} parent=39 // loop_body
          %s902 = smul.u32 %s894, 8
          %s903 = sshra.s32 %s902, 3
          %s904 = sand.u32 %s902, 7
          %s905 = smul.addr %s903, 4
          %s906 = scalar_lea.vmem [#allocation2], %s905
          %v907 = vld [vmem:[%s906] sm:$0xf]
          %909 = vrot.lane.b32.xlu0 %v445, 104
          %v910 = vpop.permute.xlu0 %909
          %v912 = vunpack.c.l.b16 %v907
          %v913 = vpack.c.b16 %v912, %v912
          %914 = vrot.lane.b32.xlu0 %v913, 104
          %v915 = vpop.permute.xlu0 %914
          %v917 = vsel %vm591, %v910, 0
          %v920 = vsel %vm591, %v915, 0
          %922 = vmatprep.subr.bf16.mxu0 0
          %923 = vmatpush1.bf16.xpose.msra.mxu0 0
          %924 = vmatprep.subr.bf16.mxu0 0
          %925 = vmatpush1.bf16.xpose.msra.mxu0 0
          %926 = vmatprep.subr.bf16.mxu0 0
          %927 = vmatpush1.bf16.xpose.msra.mxu0 0
          %928 = vmatprep.subr.bf16.mxu0 0
          %929 = vmatpush1.bf16.xpose.msra.mxu0 0
          %930 = vmatprep.subr.bf16.mxu0 0
          %931 = vmatpush1.bf16.xpose.msra.mxu0 0
          %932 = vmatprep.subr.bf16.mxu0 0
          %933 = vmatpush1.bf16.xpose.msra.mxu0 0
          %934 = vmatprep.subr.bf16.mxu0 0
          %935 = vmatpush1.bf16.xpose.msra.mxu0 0
          %936 = vmatprep.subr.bf16.mxu0 0
          %937 = vmatpush1.bf16.xpose.msra.mxu0 %v920
          %938 = vmatprep.subr.bf16.mxu0 0
          %939 = vmatpush2.bf16.xpose.msra.mxu0 0
          %940 = vmatprep.subr.bf16.mxu0 0
          %941 = vmatpush2.bf16.xpose.msra.mxu0 0
          %942 = vmatprep.subr.bf16.mxu0 0
          %943 = vmatpush2.bf16.xpose.msra.mxu0 0
          %944 = vmatprep.subr.bf16.mxu0 0
          %945 = vmatpush2.bf16.xpose.msra.mxu0 0
          %946 = vmatprep.subr.bf16.mxu0 0
          %947 = vmatpush2.bf16.xpose.msra.mxu0 0
          %948 = vmatprep.subr.bf16.mxu0 0
          %949 = vmatpush2.bf16.xpose.msra.mxu0 0
          %950 = vmatprep.subr.bf16.mxu0 0
          %951 = vmatpush2.bf16.xpose.msra.mxu0 0
          %952 = vmatprep.subr.bf16.mxu0 0
          %953 = vmatpush2.bf16.xpose.msra.mxu0 0
          %954 = vmatprep.mubr.bf16.mxu0 0
          %955 = vmatmul.mubr.bf16.gmra.mxu0 %v917
          %v956 = vpop.f32.mrf.mxu0
          %v957 = vadd.f32 0.0, %v956
          %v958 = vpop.f32.mrf.mxu0
          %v959 = vpop.f32.mrf.mxu0
          %v960 = vpop.f32.mrf.mxu0
          %961 = vdwg.mxu0
          %v962 = vlaneseq
          %v963 = vand.u32 %v962, 127
          %v964 = vstv %s902
          %v965 = vadd.s32 %v964, %v963
          %vm966 = vcmp.gt.s32.totalorder %v965, %v449
          %v967 = vsel %vm966, -1e+30, %v957
          %v968 = vsel %vm591, %v967, -inf
          %969 = vmax.xlane.f32.xlu0 %v968
          %v970 = vpop.xlane.xlu0 %969
          %v971 = vmax.f32 %v899, %v970
          %v972 = vsub.f32 %v899, %v971
          %v973 = vmul.f32 %v972, 1.442695
          %v974 = vpow.pop %v973
          %v975 = vsub.f32 %v967, %v971
          %v976 = vmul.f32 %v975, 1.442695
          %v977 = vpow.pop %v976
          %v978 = vmul.f32 %v974, %v900
          %v979 = vsel %vm591, %v977, 0.0
          %980 = vadd.xlane.f32.xlu0 %v979
          %v981 = vpop.xlane.xlu0 %980
          %v982 = vadd.f32 %v978, %v981
          %v983 = vmul.f32 %v974, %v901
          %v984 = vpack.c.bf16 %v977, %v977
          %985 = vrot.lane.b32.xlu0 %v913, 72
          %v986 = vpop.permute.xlu0 %985
          %v988 = vsel %vm591, %v984, 0
          %vm990 = vcmask 1043456
          %v992 = vsel %vm990, %v986, 0
          %994 = vmatprep.subr.bf16.mxu0 0
          %995 = vmatpush1.bf16.msra.mxu0 0
          %996 = vmatprep.subr.bf16.mxu0 0
          %997 = vmatpush1.bf16.msra.mxu0 0
          %998 = vmatprep.subr.bf16.mxu0 0
          %999 = vmatpush1.bf16.msra.mxu0 0
          %1000 = vmatprep.subr.bf16.mxu0 0
          %1001 = vmatpush1.bf16.msra.mxu0 0
          %1002 = vmatprep.subr.bf16.mxu0 0
          %1003 = vmatpush1.bf16.msra.mxu0 0
          %1004 = vmatprep.subr.bf16.mxu0 0
          %1005 = vmatpush1.bf16.msra.mxu0 0
          %1006 = vmatprep.subr.bf16.mxu0 0
          %1007 = vmatpush1.bf16.msra.mxu0 0
          %1008 = vmatprep.subr.bf16.mxu0 0
          %1009 = vmatpush1.bf16.msra.mxu0 %v992
          %1010 = vmatprep.subr.bf16.mxu0 0
          %1011 = vmatpush2.bf16.msra.mxu0 0
          %1012 = vmatprep.subr.bf16.mxu0 0
          %1013 = vmatpush2.bf16.msra.mxu0 0
          %1014 = vmatprep.subr.bf16.mxu0 0
          %1015 = vmatpush2.bf16.msra.mxu0 0
          %1016 = vmatprep.subr.bf16.mxu0 0
          %1017 = vmatpush2.bf16.msra.mxu0 0
          %1018 = vmatprep.subr.bf16.mxu0 0
          %1019 = vmatpush2.bf16.msra.mxu0 0
          %1020 = vmatprep.subr.bf16.mxu0 0
          %1021 = vmatpush2.bf16.msra.mxu0 0
          %1022 = vmatprep.subr.bf16.mxu0 0
          %1023 = vmatpush2.bf16.msra.mxu0 0
          %1024 = vmatprep.subr.bf16.mxu0 0
          %1025 = vmatpush2.bf16.msra.mxu0 0
          %1026 = vmatprep.mubr.bf16.mxu0 0
          %1027 = vmatmul.mubr.bf16.gmra.mxu0 %v988
          %v1028 = vpop.f32.mrf.mxu0
          %v1029 = vadd.f32 0.0, %v1028
          %v1030 = vpop.f32.mrf.mxu0
          %v1031 = vpop.f32.mrf.mxu0
          %v1032 = vpop.f32.mrf.mxu0
          %1033 = vdwg.mxu0
          %v1034 = vadd.f32 %v983, %v1029
        $region86: #{tpu_custom_call.1} parent=39 // loop_footer
          %s896 = sadd.s32 %s894, 1
        $region87: #{tpu_custom_call.1} parent=39 // loop_footer_branch
          %893 = sbr.rel target = $region83
        $region88: #{tpu_custom_call.1} parent=39 // loop_exit
          _
        %v1035 = vrcp.pop %v900
        %v1036 = vmul.f32 %v901, %v1035
        %1038 = vrot.lane.b32.xlu0 %v1036, 24
        %v1039 = vpop.permute.xlu0 %1038
        %vm1041 = vcmask 261312
        %1042 = vst.msk [vmem:[#allocation3] sm:$0xff] %vm1041, %v1039
        %v1043 = vld [vmem:[#allocation3] sm:$0xff]
        %v1044 = vpack.c.bf16 %v1043, %v1043
        %v1045 = vld [vmem:[#allocation10] sm:$0xf]
        %v1046 = vld [vmem:[#allocation10 + $0x4] sm:$0xf]
        %v1047 = vld [vmem:[#allocation10 + $0x8] sm:$0xf]
        %v1048 = vld [vmem:[#allocation10 + $0xc] sm:$0xf]
        %v1049 = vld [vmem:[%s4] sm:$0x1]
        %v1051 = vlaneseq
        %v1052 = vshrl.u32 %v1051, 7
        %v1053 = vsub.s32 0, %v1052
        %v1054 = vrot.slane %v1049, %v1053
        %v1060 = vunpack.c.l.b16 %v1045
        %v1061 = vunpack.c.l.b16 %v1046
        %v1062 = vunpack.c.l.b16 %v1047
        %v1063 = vunpack.c.l.b16 %v1048
        %v1064 = vpack.c.b16 %v1061, %v1060
        %v1065 = vpack.c.b16 %v1063, %v1062
        %v1069 = vsel %vm401, %v1044, 0
        %1071 = vmatprep.subr.bf16.mxu0 0
        %1072 = vmatpush1.bf16.msra.mxu0 0
        %1073 = vmatprep.subr.bf16.mxu0 0
        %1074 = vmatpush1.bf16.msra.mxu0 0
        %1075 = vmatprep.subr.bf16.mxu0 0
        %1076 = vmatpush1.bf16.msra.mxu0 0
        %1077 = vmatprep.subr.bf16.mxu0 0
        %1078 = vmatpush1.bf16.msra.mxu0 0
        %1079 = vmatprep.subr.bf16.mxu0 0
        %1080 = vmatpush1.bf16.msra.mxu0 0
        %1081 = vmatprep.subr.bf16.mxu0 0
        %1082 = vmatpush1.bf16.msra.mxu0 0
        %1083 = vmatprep.subr.bf16.mxu0 0
        %1084 = vmatpush1.bf16.msra.mxu0 %v1065
        %1085 = vmatprep.subr.bf16.mxu0 0
        %1086 = vmatpush1.bf16.msra.mxu0 %v1064
        %1087 = vmatprep.subr.bf16.mxu0 0
        %1088 = vmatpush2.bf16.msra.mxu0 0
        %1089 = vmatprep.subr.bf16.mxu0 0
        %1090 = vmatpush2.bf16.msra.mxu0 0
        %1091 = vmatprep.subr.bf16.mxu0 0
        %1092 = vmatpush2.bf16.msra.mxu0 0
        %1093 = vmatprep.subr.bf16.mxu0 0
        %1094 = vmatpush2.bf16.msra.mxu0 0
        %1095 = vmatprep.subr.bf16.mxu0 0
        %1096 = vmatpush2.bf16.msra.mxu0 0
        %1097 = vmatprep.subr.bf16.mxu0 0
        %1098 = vmatpush2.bf16.msra.mxu0 0
        %1099 = vmatprep.subr.bf16.mxu0 0
        %1100 = vmatpush2.bf16.msra.mxu0 0
        %1101 = vmatprep.subr.bf16.mxu0 0
        %1102 = vmatpush2.bf16.msra.mxu0 0
        %1103 = vmatprep.mubr.bf16.mxu0 0
        %1104 = vmatmul.mubr.bf16.gmra.mxu0 %v1069
        %v1105 = vpop.f32.mrf.mxu0
        %v1106 = vadd.f32 %v1054, %v1105
        %v1107 = vpop.f32.mrf.mxu0
        %v1108 = vpop.f32.mrf.mxu0
        %v1109 = vpop.f32.mrf.mxu0
        %1110 = vdwg.mxu0
        %1111 = vst.msk [vmem:[%s300] sm:$0xff] %vm401, %v1106
        %s1112 = sand.u32 %s156, 1
        %s1113 = scalar_lea.sflag [#allocation6], %s1112
        %s1114 = sand.u32 %s156, 1
        %s1115 = smul.addr %s1114, 8
        %s1116 = scalar_lea.vmem [#allocation12], %s1115
        // Predicated region
        $region89: #{tpu_custom_call.1} parent=39 // pred_check
          %p1117 = pneg %p166
        $region90: #{tpu_custom_call.1} parent=39 // pred_check_branch
          %1119 = sbr.rel (%p1117) target = $region92
        $region91: #{tpu_custom_call.1} parent=39 // pred_region
          %s1121 = ssub.s32 128, 128
          %1122 = vsyncadd %s1113, %s1121
          %s1123 = smul.addr %s28, 2
          %s1124 = sadd.s32 %s29, %s1123
          %s1125 = smul.addr %s1124, 128
          %s1126 = scalar_lea.hbm %s5, %s1125
          %s1128 = sshll.u32 %s1116, 4
          %s1129 = int_to_ptr.vmem [resolvable:$true] %s1128
          %1131 = dma.vmem_to_hbm [thread:$0]  %s1129, 128, %s1126, %s1113
        $region92: #{tpu_custom_call.1} parent=39 // pred_fallthru
          _
      $region40: #{tpu_custom_call.1} parent=5 // pred_fallthru
        _
      %p1132 = scmp.le.s32.totalorder 2, %s19
      // Predicated region
      $region93: #{tpu_custom_call.1} parent=5 // pred_check
        %p1133 = pneg %p1132
      $region94: #{tpu_custom_call.1} parent=5 // pred_check_branch
        %1135 = sbr.rel (%p1133) target = $region96
      $region95: #{tpu_custom_call.1} parent=5 // pred_region
        %s1136 = ssub.s32 %s19, 2
        // Predicated region
        $region97: #{tpu_custom_call.1} parent=95 // pred_check
          %p1137 = pneg %p172
        $region98: #{tpu_custom_call.1} parent=95 // pred_check_branch
          %1139 = sbr.rel (%p1137) target = $region100
        $region99: #{tpu_custom_call.1} parent=95 // pred_region
          %s1140 = sand.u32 %s157, 1
          %s1141 = scalar_lea.sflag [#allocation6], %s1140
          %s1142 = sand.u32 %s157, 1
          %s1143 = smul.addr %s1142, 8
          %s1144 = scalar_lea.vmem [#allocation12], %s1143
          %1145 = dma.done %s1141, 128
        $region100: #{tpu_custom_call.1} parent=95 // pred_fallthru
          _
      $region96: #{tpu_custom_call.1} parent=5 // pred_fallthru
        _
    $region6: #{tpu_custom_call.1} parent=1 // loop_footer
      %s23 = sadd.s32 1, %s19
    $region7: #{tpu_custom_call.1} parent=1 // loop_footer_branch
      %18 = sbr.rel target = $region3
    $region8: #{tpu_custom_call.1} parent=1 // loop_exit
      _
    %1146 = vsyncpa [#allocation5], 1
    %s1147 = scalar_lea.sflag [#allocation5], 1
    %1148 = vsyncpa %s1147, 1
    %1149 = vsyncpa [#allocation8], 1
    %1150 = vsyncpa [#allocation11], 1
    %1151 = vsyncpa [#allocation6], 1
    %s1152 = scalar_lea.sflag [#allocation6], 1
    %1153 = vsyncpa %s1152, 1

</llo_original>
